<compile_context>
chip_gen: v6e
topology: v6e:2x2x1
jax: 0.10.0
libtpu: 0.0.40
codegen_flags: <defaults>
</compile_context>

<pallas_src>
import jax
import jax.numpy as jnp
from jax import lax
from jax.experimental import pallas as pl
from jax.experimental.pallas import tpu as pltpu

# ---- small, module-consistent hyperparameters -------------------------------
VOCAB   = 64   # vocab_size
EMB     = 16   # embedding_dim
HID     = 32   # hidden_dim
LATENT  = 8    # latent_dim
TOPICS  = 8    # num_topics
B       = 2    # batch
T       = 8    # sequence length


# ---- Pallas kernel -----------------------------------------------------------
def decoder_kernel(tok_ref, z_ref, tv_ref, emb_ref,
                   wl_t_ref, bl_ref,
                   w_lstm_ref, b_gate_ref,
                   w_out_big_ref, b_out_big_ref,
                   out_ref, hs_ref):
    H = HID

    # ---- h_0 = tanh([z, topic_vec] @ W_l^T + b_l) as two small matmuls ------
    wl_t = wl_t_ref[...]                                       # (L+K, H)
    h = jnp.tanh(
        jnp.dot(z_ref[...], wl_t[0:LATENT, :],
                preferred_element_type=jnp.float32)
        + jnp.dot(tv_ref[...], wl_t[LATENT:LATENT + TOPICS, :],
                  preferred_element_type=jnp.float32)
        + bl_ref[...])                                         # (B, H)
    c = jnp.zeros_like(h)

    # ---- embedding gather fused in-kernel: one-hot @ table (off serial path)
    onehot = (tok_ref[...] ==
              lax.broadcasted_iota(jnp.int32, (T * B, VOCAB), 1)
              ).astype(jnp.float32)                            # (T*B, V)
    x_flat = jnp.dot(onehot, emb_ref[...],
                     preferred_element_type=jnp.float32)       # (T*B, E) time-major

    # packed, pre-transposed, gate-scaled LSTM weights:
    # rows [0:E] = W_ih^T, [E:E+H] = W_hh^T; i/f/o columns pre-scaled by 0.5
    w_lstm = w_lstm_ref[...]                                   # (E + H, 4H)
    w_ih_t = w_lstm[0:EMB, :]
    w_hh_t = w_lstm[EMB:EMB + H, :]

    # input projection for ALL timesteps in one matmul (off the serial path)
    x_gates = (jnp.dot(x_flat, w_ih_t, preferred_element_type=jnp.float32)
               + b_gate_ref[...])                              # (T*B, 4H)

    for t in range(T):                                         # fully unrolled
        xg_t = x_gates[t * B:(t + 1) * B, :]                   # (B, 4H)
        # ONE transcendental push covers all four gates:
        #   i/f/o columns were pre-scaled by 0.5 -> sigmoid(x) = 0.5*tanh(x/2)+0.5
        #   g column unscaled                    -> tanh(x) directly
        th = jnp.tanh(xg_t + jnp.dot(h, w_hh_t,
                                     preferred_element_type=jnp.float32))
        sg = 0.5 * th + 0.5                                    # full-vreg VPU affine
        i_g = sg[:, 0 * H:1 * H]
        f_g = sg[:, 1 * H:2 * H]
        g_g = th[:, 2 * H:3 * H]
        o_g = sg[:, 3 * H:4 * H]
        c = f_g * c + i_g * g_g
        h = o_g * jnp.tanh(c)                                  # 2nd (last) EUP push
        # pack [h_t(b=0) | h_t(b=1)] and store straight into the VMEM slab
        hs_ref[pl.ds(t, 1), :] = jnp.concatenate(
            [h[b:b + 1, :] for b in range(B)], axis=1)         # (1, B*H)

    # single vocab projection against block-diagonal weight -> lane-dense (8,128)
    logits = (jnp.dot(hs_ref[...], w_out_big_ref[...],
                      preferred_element_type=jnp.float32)
              + b_out_big_ref[...])                            # (T, B*V)
    out_ref[...] = logits.astype(out_ref.dtype)


# ---- one-time parameter fusion (cache the result; not per-call) --------------
def prepare_decoder_params(p):
    # scale i/f/o gate columns by 0.5 so sigmoid can be derived from one tanh
    gate_scale = jnp.concatenate([
        jnp.full((1, 2 * HID), 0.5, jnp.float32),   # i, f
        jnp.full((1, HID), 1.0, jnp.float32),       # g
        jnp.full((1, HID), 0.5, jnp.float32),       # o
    ], axis=1)                                      # (1, 4H)
    w_ih_t = p["w_ih"].T * gate_scale               # (E, 4H)
    w_hh_t = p["w_hh"].T * gate_scale               # (H, 4H)
    b_gate = (p["b_ih"] + p["b_hh"]) * gate_scale   # (1, 4H)
    return {
        "emb":       p["embedding"].astype(jnp.float32),                     # (V, E)
        "wl_t":      p["wl"].T,                                              # (L+K, H)
        "bl":        p["bl"],                                                # (1, H)
        "w_lstm":    jnp.concatenate([w_ih_t, w_hh_t], axis=0),              # (E+H, 4H)
        "b_gate":    b_gate,                                                 # (1, 4H)
        "w_out_big": jnp.kron(jnp.eye(B, dtype=jnp.float32), p["w_out"].T),  # (B*H, B*V)
        "b_out_big": jnp.tile(p["b_out"], (1, B)),                           # (1, B*V)
    }


# ---- forward wrapper (single jit dispatch) ------------------------------------
@jax.jit
def decoder_forward(x_tokens, z, topic_vec, fp):
    # only remaining per-call glue: time-major int token column (2,8) -> (16,1)
    tok_tm = jnp.transpose(x_tokens, (1, 0)).reshape(T * B, 1).astype(jnp.int32)

    vmem = pl.BlockSpec(memory_space=pltpu.MemorySpace.VMEM)
    logits_pack = pl.pallas_call(
        decoder_kernel,
        out_shape=jax.ShapeDtypeStruct((T, B * VOCAB), jnp.float32),
        in_specs=[vmem] * 10,
        out_specs=vmem,
        scratch_shapes=[pltpu.VMEM((T, B * HID), jnp.float32)],
    )(tok_tm, z, topic_vec,
      fp["emb"], fp["wl_t"], fp["bl"],
      fp["w_lstm"], fp["b_gate"], fp["w_out_big"], fp["b_out_big"])

    # (T, B*V) -> (T, B, V) -> (B, T, V) batch_first, matching kernel packing
    return jnp.transpose(logits_pack.reshape(T, B, VOCAB), (1, 0, 2))


# ---- pure-JAX reference (for correctness check only) -------------------------
def decoder_reference(x_tokens, z, topic_vec, p):
    zc = jnp.concatenate([z, topic_vec], axis=1)
    h0 = jnp.tanh(zc @ p["wl"].T + p["bl"][0])
    c0 = jnp.zeros_like(h0)
    x_emb = p["embedding"][x_tokens]                           # (B, T, E)

    def step(carry, x_t):
        h, c = carry
        gates = x_t @ p["w_ih"].T + p["b_ih"][0] + h @ p["w_hh"].T + p["b_hh"][0]
        i_g = jax.nn.sigmoid(gates[:, 0 * HID:1 * HID])
        f_g = jax.nn.sigmoid(gates[:, 1 * HID:2 * HID])
        g_g = jnp.tanh(gates[:, 2 * HID:3 * HID])
        o_g = jax.nn.sigmoid(gates[:, 3 * HID:4 * HID])
        c_new = f_g * c + i_g * g_g
        h_new = o_g * jnp.tanh(c_new)
        return (h_new, c_new), h_new

    _, hs = lax.scan(step, (h0, c0), jnp.transpose(x_emb, (1, 0, 2)))  # (T, B, H)
    outputs = jnp.transpose(hs, (1, 0, 2))                     # (B, T, H)
    return outputs @ p["w_out"].T + p["b_out"][0]              # (B, T, V)


# ---- deterministic parameter init --------------------------------------------
def init_params(key):
    ks = jax.random.split(key, 8)
    s = 0.1
    return {
        # latent_to_hidden: Linear(LATENT+TOPICS -> HID)
        "wl":  s * jax.random.normal(ks[0], (HID, LATENT + TOPICS), jnp.float32),
        "bl":  s * jax.random.normal(ks[1], (1, HID), jnp.float32),
        # lstm: weight_ih (4H, E), weight_hh (4H, H), biases (1, 4H)
        "w_ih": s * jax.random.normal(ks[2], (4 * HID, EMB), jnp.float32),
        "w_hh": s * jax.random.normal(ks[3], (4 * HID, HID), jnp.float32),
        "b_ih": s * jax.random.normal(ks[4], (1, 4 * HID), jnp.float32),
        "b_hh": s * jax.random.normal(ks[5], (1, 4 * HID), jnp.float32),
        # outputs2vocab: Linear(HID -> VOCAB)
        "w_out": s * jax.random.normal(ks[6], (VOCAB, HID), jnp.float32),
        "b_out": s * jax.random.normal(ks[7], (1, VOCAB), jnp.float32),
        # embedding: (VOCAB, EMB)
        "embedding": s * jax.random.normal(jax.random.fold_in(key, 99),
                                           (VOCAB, EMB), jnp.float32),
    }


if __name__ == "__main__":
    # TODO(synk): torch.utils.checkpoint path is training-only recompute; this
    # kernel implements the inference forward (identical math).
    key = jax.random.PRNGKey(0)
    k_tok, k_z, k_t, k_p = jax.random.split(key, 4)

    x_tokens  = jax.random.randint(k_tok, (B, T), 0, VOCAB, dtype=jnp.int32)
    z         = jax.random.normal(k_z, (B, LATENT), jnp.float32)
    topic_vec = jax.random.normal(k_t, (B, TOPICS), jnp.float32)
    params    = init_params(k_p)

    # fuse/transposed weights ONCE (cache this alongside the params)
    fused = jax.tree_util.tree_map(jax.block_until_ready,
                                   prepare_decoder_params(params))

    logits = decoder_forward(x_tokens, z, topic_vec, fused)
    logits = jax.block_until_ready(logits)

    ref = decoder_reference(x_tokens, z, topic_vec, params)
    assert logits.shape == (B, T, VOCAB), logits.shape
    assert jnp.allclose(logits, ref, atol=1e-4, rtol=1e-4), "mismatch vs reference"

    print("KERNEL_OK")
</pallas_src>

<mosaic_0001>
module attributes {stable_mosaic.version = 11 : i64} {
  func.func @decoder_kernel(%arg0: memref<16x1xi32, #tpu.memory_space<vmem>>, %arg1: memref<2x8xf32, #tpu.memory_space<vmem>>, %arg2: memref<2x8xf32, #tpu.memory_space<vmem>>, %arg3: memref<64x16xf32, #tpu.memory_space<vmem>>, %arg4: memref<16x32xf32, #tpu.memory_space<vmem>>, %arg5: memref<1x32xf32, #tpu.memory_space<vmem>>, %arg6: memref<48x128xf32, #tpu.memory_space<vmem>>, %arg7: memref<1x128xf32, #tpu.memory_space<vmem>>, %arg8: memref<64x128xf32, #tpu.memory_space<vmem>>, %arg9: memref<1x128xf32, #tpu.memory_space<vmem>>, %arg10: memref<8x128xf32, #tpu.memory_space<vmem>>, %arg11: memref<8x64xf32, #tpu.memory_space<vmem>>) attributes {dimension_semantics = [], scalar_prefetch = 0 : i64, scratch_operands = 1 : i64, tpu.core_type = #tpu.core_type<tc>} {
    %c0 = arith.constant 0 : index
    %c0_0 = arith.constant 0 : index
    %0 = vector.load %arg4[%c0, %c0_0] : memref<16x32xf32, #tpu.memory_space<vmem>>, vector<16x32xf32>
    %c0_1 = arith.constant 0 : index
    %c0_2 = arith.constant 0 : index
    %1 = vector.load %arg1[%c0_1, %c0_2] : memref<2x8xf32, #tpu.memory_space<vmem>>, vector<2x8xf32>
    %2 = vector.extract_strided_slice %0 {offsets = [0, 0], sizes = [8, 32], strides = [1, 1]} : vector<16x32xf32> to vector<8x32xf32>
    %cst = arith.constant dense<0.000000e+00> : vector<2x32xf32>
    %3 = tpu.matmul %1, %2, %cst {dimension_numbers = #tpu.dot_dimension_numbers<[1], [0], [0], [1], [0, 0, 1, 1], [], []>} : vector<2x8xf32>, vector<8x32xf32>, vector<2x32xf32> -> vector<2x32xf32>
    %c0_3 = arith.constant 0 : index
    %c0_4 = arith.constant 0 : index
    %4 = vector.load %arg2[%c0_3, %c0_4] : memref<2x8xf32, #tpu.memory_space<vmem>>, vector<2x8xf32>
    %5 = vector.extract_strided_slice %0 {offsets = [8, 0], sizes = [8, 32], strides = [1, 1]} : vector<16x32xf32> to vector<8x32xf32>
    %cst_5 = arith.constant dense<0.000000e+00> : vector<2x32xf32>
    %6 = tpu.matmul %4, %5, %cst_5 {dimension_numbers = #tpu.dot_dimension_numbers<[1], [0], [0], [1], [0, 0, 1, 1], [], []>} : vector<2x8xf32>, vector<8x32xf32>, vector<2x32xf32> -> vector<2x32xf32>
    %7 = arith.addf %3, %6 : vector<2x32xf32>
    %c0_6 = arith.constant 0 : index
    %c0_7 = arith.constant 0 : index
    %8 = vector.load %arg5[%c0_6, %c0_7] : memref<1x32xf32, #tpu.memory_space<vmem>>, vector<1x32xf32>
    %9 = vector.broadcast %8 : vector<1x32xf32> to vector<2x32xf32>
    %10 = arith.addf %7, %9 : vector<2x32xf32>
    %11 = math.tanh %10 : vector<2x32xf32>
    %cst_8 = arith.constant 0.000000e+00 : f32
    %12 = vector.broadcast %cst_8 : f32 to vector<2x32xf32>
    %c0_9 = arith.constant 0 : index
    %c0_10 = arith.constant 0 : index
    %13 = vector.load %arg0[%c0_9, %c0_10] : memref<16x1xi32, #tpu.memory_space<vmem>>, vector<16x1xi32>
    %14 = tpu.iota {dimensions = array<i32: 1>} : vector<16x64xi32>
    %15 = vector.broadcast %13 : vector<16x1xi32> to vector<16x64xi32>
    %16 = arith.cmpi eq, %15, %14 : vector<16x64xi32>
    %17 = arith.extui %16 : vector<16x64xi1> to vector<16x64xi32>
    %18 = arith.sitofp %17 : vector<16x64xi32> to vector<16x64xf32>
    %c0_11 = arith.constant 0 : index
    %c0_12 = arith.constant 0 : index
    %19 = vector.load %arg3[%c0_11, %c0_12] : memref<64x16xf32, #tpu.memory_space<vmem>>, vector<64x16xf32>
    %cst_13 = arith.constant dense<0.000000e+00> : vector<16x16xf32>
    %20 = tpu.matmul %18, %19, %cst_13 {dimension_numbers = #tpu.dot_dimension_numbers<[1], [0], [0], [1], [0, 0, 1, 1], [], []>} : vector<16x64xf32>, vector<64x16xf32>, vector<16x16xf32> -> vector<16x16xf32>
    %c0_14 = arith.constant 0 : index
    %c0_15 = arith.constant 0 : index
    %21 = vector.load %arg6[%c0_14, %c0_15] : memref<48x128xf32, #tpu.memory_space<vmem>>, vector<48x128xf32>
    %22 = vector.extract_strided_slice %21 {offsets = [0, 0], sizes = [16, 128], strides = [1, 1]} : vector<48x128xf32> to vector<16x128xf32>
    %23 = vector.extract_strided_slice %21 {offsets = [16, 0], sizes = [32, 128], strides = [1, 1]} : vector<48x128xf32> to vector<32x128xf32>
    %cst_16 = arith.constant dense<0.000000e+00> : vector<16x128xf32>
    %24 = tpu.matmul %20, %22, %cst_16 {dimension_numbers = #tpu.dot_dimension_numbers<[1], [0], [0], [1], [0, 0, 1, 1], [], []>} : vector<16x16xf32>, vector<16x128xf32>, vector<16x128xf32> -> vector<16x128xf32>
    %c0_17 = arith.constant 0 : index
    %c0_18 = arith.constant 0 : index
    %25 = vector.load %arg7[%c0_17, %c0_18] : memref<1x128xf32, #tpu.memory_space<vmem>>, vector<1x128xf32>
    %26 = vector.broadcast %25 : vector<1x128xf32> to vector<16x128xf32>
    %27 = arith.addf %24, %26 : vector<16x128xf32>
    %28 = vector.extract_strided_slice %27 {offsets = [0, 0], sizes = [2, 128], strides = [1, 1]} : vector<16x128xf32> to vector<2x128xf32>
    %cst_19 = arith.constant dense<0.000000e+00> : vector<2x128xf32>
    %29 = tpu.matmul %11, %23, %cst_19 {dimension_numbers = #tpu.dot_dimension_numbers<[1], [0], [0], [1], [0, 0, 1, 1], [], []>} : vector<2x32xf32>, vector<32x128xf32>, vector<2x128xf32> -> vector<2x128xf32>
    %30 = arith.addf %28, %29 : vector<2x128xf32>
    %31 = math.tanh %30 : vector<2x128xf32>
    %cst_20 = arith.constant 5.000000e-01 : f32
    %32 = vector.broadcast %cst_20 : f32 to vector<2x128xf32>
    %33 = arith.mulf %32, %31 : vector<2x128xf32>
    %cst_21 = arith.constant 5.000000e-01 : f32
    %34 = vector.broadcast %cst_21 : f32 to vector<2x128xf32>
    %35 = arith.addf %33, %34 : vector<2x128xf32>
    %36 = vector.extract_strided_slice %35 {offsets = [0, 0], sizes = [2, 32], strides = [1, 1]} : vector<2x128xf32> to vector<2x32xf32>
    %37 = vector.extract_strided_slice %35 {offsets = [0, 32], sizes = [2, 32], strides = [1, 1]} : vector<2x128xf32> to vector<2x32xf32>
    %38 = vector.extract_strided_slice %31 {offsets = [0, 64], sizes = [2, 32], strides = [1, 1]} : vector<2x128xf32> to vector<2x32xf32>
    %39 = vector.extract_strided_slice %35 {offsets = [0, 96], sizes = [2, 32], strides = [1, 1]} : vector<2x128xf32> to vector<2x32xf32>
    %40 = arith.mulf %37, %12 : vector<2x32xf32>
    %41 = arith.mulf %36, %38 : vector<2x32xf32>
    %42 = arith.addf %40, %41 : vector<2x32xf32>
    %43 = math.tanh %42 : vector<2x32xf32>
    %44 = arith.mulf %39, %43 : vector<2x32xf32>
    %45 = vector.extract_strided_slice %44 {offsets = [0, 0], sizes = [1, 32], strides = [1, 1]} : vector<2x32xf32> to vector<1x32xf32>
    %46 = vector.extract_strided_slice %44 {offsets = [1, 0], sizes = [1, 32], strides = [1, 1]} : vector<2x32xf32> to vector<1x32xf32>
    %47 = tpu.concatenate %45, %46 in 1 : vector<1x32xf32>, vector<1x32xf32> -> vector<1x64xf32>
    %c0_22 = arith.constant 0 : index
    %c0_23 = arith.constant 0 : index
    %48 = vector.load %arg11[%c0_22, %c0_23] : memref<8x64xf32, #tpu.memory_space<vmem>>, vector<1x64xf32>
    tpu.vector_store %arg11[%c0_22, %c0_23], %47 {strides = array<i32>} : memref<8x64xf32, #tpu.memory_space<vmem>>, vector<1x64xf32>,
    %49 = vector.extract_strided_slice %27 {offsets = [2, 0], sizes = [2, 128], strides = [1, 1]} : vector<16x128xf32> to vector<2x128xf32>
    %cst_24 = arith.constant dense<0.000000e+00> : vector<2x128xf32>
    %50 = tpu.matmul %44, %23, %cst_24 {dimension_numbers = #tpu.dot_dimension_numbers<[1], [0], [0], [1], [0, 0, 1, 1], [], []>} : vector<2x32xf32>, vector<32x128xf32>, vector<2x128xf32> -> vector<2x128xf32>
    %51 = arith.addf %49, %50 : vector<2x128xf32>
    %52 = math.tanh %51 : vector<2x128xf32>
    %cst_25 = arith.constant 5.000000e-01 : f32
    %53 = vector.broadcast %cst_25 : f32 to vector<2x128xf32>
    %54 = arith.mulf %53, %52 : vector<2x128xf32>
    %cst_26 = arith.constant 5.000000e-01 : f32
    %55 = vector.broadcast %cst_26 : f32 to vector<2x128xf32>
    %56 = arith.addf %54, %55 : vector<2x128xf32>
    %57 = vector.extract_strided_slice %56 {offsets = [0, 0], sizes = [2, 32], strides = [1, 1]} : vector<2x128xf32> to vector<2x32xf32>
    %58 = vector.extract_strided_slice %56 {offsets = [0, 32], sizes = [2, 32], strides = [1, 1]} : vector<2x128xf32> to vector<2x32xf32>
    %59 = vector.extract_strided_slice %52 {offsets = [0, 64], sizes = [2, 32], strides = [1, 1]} : vector<2x128xf32> to vector<2x32xf32>
    %60 = vector.extract_strided_slice %56 {offsets = [0, 96], sizes = [2, 32], strides = [1, 1]} : vector<2x128xf32> to vector<2x32xf32>
    %61 = arith.mulf %58, %42 : vector<2x32xf32>
    %62 = arith.mulf %57, %59 : vector<2x32xf32>
    %63 = arith.addf %61, %62 : vector<2x32xf32>
    %64 = math.tanh %63 : vector<2x32xf32>
    %65 = arith.mulf %60, %64 : vector<2x32xf32>
    %66 = vector.extract_strided_slice %65 {offsets = [0, 0], sizes = [1, 32], strides = [1, 1]} : vector<2x32xf32> to vector<1x32xf32>
    %67 = vector.extract_strided_slice %65 {offsets = [1, 0], sizes = [1, 32], strides = [1, 1]} : vector<2x32xf32> to vector<1x32xf32>
    %68 = tpu.concatenate %66, %67 in 1 : vector<1x32xf32>, vector<1x32xf32> -> vector<1x64xf32>
    %c1 = arith.constant 1 : index
    %c0_27 = arith.constant 0 : index
    %69 = vector.load %arg11[%c1, %c0_27] : memref<8x64xf32, #tpu.memory_space<vmem>>, vector<1x64xf32>
    tpu.vector_store %arg11[%c1, %c0_27], %68 {strides = array<i32>} : memref<8x64xf32, #tpu.memory_space<vmem>>, vector<1x64xf32>,
    %70 = vector.extract_strided_slice %27 {offsets = [4, 0], sizes = [2, 128], strides = [1, 1]} : vector<16x128xf32> to vector<2x128xf32>
    %cst_28 = arith.constant dense<0.000000e+00> : vector<2x128xf32>
    %71 = tpu.matmul %65, %23, %cst_28 {dimension_numbers = #tpu.dot_dimension_numbers<[1], [0], [0], [1], [0, 0, 1, 1], [], []>} : vector<2x32xf32>, vector<32x128xf32>, vector<2x128xf32> -> vector<2x128xf32>
    %72 = arith.addf %70, %71 : vector<2x128xf32>
    %73 = math.tanh %72 : vector<2x128xf32>
    %cst_29 = arith.constant 5.000000e-01 : f32
    %74 = vector.broadcast %cst_29 : f32 to vector<2x128xf32>
    %75 = arith.mulf %74, %73 : vector<2x128xf32>
    %cst_30 = arith.constant 5.000000e-01 : f32
    %76 = vector.broadcast %cst_30 : f32 to vector<2x128xf32>
    %77 = arith.addf %75, %76 : vector<2x128xf32>
    %78 = vector.extract_strided_slice %77 {offsets = [0, 0], sizes = [2, 32], strides = [1, 1]} : vector<2x128xf32> to vector<2x32xf32>
    %79 = vector.extract_strided_slice %77 {offsets = [0, 32], sizes = [2, 32], strides = [1, 1]} : vector<2x128xf32> to vector<2x32xf32>
    %80 = vector.extract_strided_slice %73 {offsets = [0, 64], sizes = [2, 32], strides = [1, 1]} : vector<2x128xf32> to vector<2x32xf32>
    %81 = vector.extract_strided_slice %77 {offsets = [0, 96], sizes = [2, 32], strides = [1, 1]} : vector<2x128xf32> to vector<2x32xf32>
    %82 = arith.mulf %79, %63 : vector<2x32xf32>
    %83 = arith.mulf %78, %80 : vector<2x32xf32>
    %84 = arith.addf %82, %83 : vector<2x32xf32>
    %85 = math.tanh %84 : vector<2x32xf32>
    %86 = arith.mulf %81, %85 : vector<2x32xf32>
    %87 = vector.extract_strided_slice %86 {offsets = [0, 0], sizes = [1, 32], strides = [1, 1]} : vector<2x32xf32> to vector<1x32xf32>
    %88 = vector.extract_strided_slice %86 {offsets = [1, 0], sizes = [1, 32], strides = [1, 1]} : vector<2x32xf32> to vector<1x32xf32>
    %89 = tpu.concatenate %87, %88 in 1 : vector<1x32xf32>, vector<1x32xf32> -> vector<1x64xf32>
    %c2 = arith.constant 2 : index
    %c0_31 = arith.constant 0 : index
    %90 = vector.load %arg11[%c2, %c0_31] : memref<8x64xf32, #tpu.memory_space<vmem>>, vector<1x64xf32>
    tpu.vector_store %arg11[%c2, %c0_31], %89 {strides = array<i32>} : memref<8x64xf32, #tpu.memory_space<vmem>>, vector<1x64xf32>,
    %91 = vector.extract_strided_slice %27 {offsets = [6, 0], sizes = [2, 128], strides = [1, 1]} : vector<16x128xf32> to vector<2x128xf32>
    %cst_32 = arith.constant dense<0.000000e+00> : vector<2x128xf32>
    %92 = tpu.matmul %86, %23, %cst_32 {dimension_numbers = #tpu.dot_dimension_numbers<[1], [0], [0], [1], [0, 0, 1, 1], [], []>} : vector<2x32xf32>, vector<32x128xf32>, vector<2x128xf32> -> vector<2x128xf32>
    %93 = arith.addf %91, %92 : vector<2x128xf32>
    %94 = math.tanh %93 : vector<2x128xf32>
    %cst_33 = arith.constant 5.000000e-01 : f32
    %95 = vector.broadcast %cst_33 : f32 to vector<2x128xf32>
    %96 = arith.mulf %95, %94 : vector<2x128xf32>
    %cst_34 = arith.constant 5.000000e-01 : f32
    %97 = vector.broadcast %cst_34 : f32 to vector<2x128xf32>
    %98 = arith.addf %96, %97 : vector<2x128xf32>
    %99 = vector.extract_strided_slice %98 {offsets = [0, 0], sizes = [2, 32], strides = [1, 1]} : vector<2x128xf32> to vector<2x32xf32>
    %100 = vector.extract_strided_slice %98 {offsets = [0, 32], sizes = [2, 32], strides = [1, 1]} : vector<2x128xf32> to vector<2x32xf32>
    %101 = vector.extract_strided_slice %94 {offsets = [0, 64], sizes = [2, 32], strides = [1, 1]} : vector<2x128xf32> to vector<2x32xf32>
    %102 = vector.extract_strided_slice %98 {offsets = [0, 96], sizes = [2, 32], strides = [1, 1]} : vector<2x128xf32> to vector<2x32xf32>
    %103 = arith.mulf %100, %84 : vector<2x32xf32>
    %104 = arith.mulf %99, %101 : vector<2x32xf32>
    %105 = arith.addf %103, %104 : vector<2x32xf32>
    %106 = math.tanh %105 : vector<2x32xf32>
    %107 = arith.mulf %102, %106 : vector<2x32xf32>
    %108 = vector.extract_strided_slice %107 {offsets = [0, 0], sizes = [1, 32], strides = [1, 1]} : vector<2x32xf32> to vector<1x32xf32>
    %109 = vector.extract_strided_slice %107 {offsets = [1, 0], sizes = [1, 32], strides = [1, 1]} : vector<2x32xf32> to vector<1x32xf32>
    %110 = tpu.concatenate %108, %109 in 1 : vector<1x32xf32>, vector<1x32xf32> -> vector<1x64xf32>
    %c3 = arith.constant 3 : index
    %c0_35 = arith.constant 0 : index
    %111 = vector.load %arg11[%c3, %c0_35] : memref<8x64xf32, #tpu.memory_space<vmem>>, vector<1x64xf32>
    tpu.vector_store %arg11[%c3, %c0_35], %110 {strides = array<i32>} : memref<8x64xf32, #tpu.memory_space<vmem>>, vector<1x64xf32>,
    %112 = vector.extract_strided_slice %27 {offsets = [8, 0], sizes = [2, 128], strides = [1, 1]} : vector<16x128xf32> to vector<2x128xf32>
    %cst_36 = arith.constant dense<0.000000e+00> : vector<2x128xf32>
    %113 = tpu.matmul %107, %23, %cst_36 {dimension_numbers = #tpu.dot_dimension_numbers<[1], [0], [0], [1], [0, 0, 1, 1], [], []>} : vector<2x32xf32>, vector<32x128xf32>, vector<2x128xf32> -> vector<2x128xf32>
    %114 = arith.addf %112, %113 : vector<2x128xf32>
    %115 = math.tanh %114 : vector<2x128xf32>
    %cst_37 = arith.constant 5.000000e-01 : f32
    %116 = vector.broadcast %cst_37 : f32 to vector<2x128xf32>
    %117 = arith.mulf %116, %115 : vector<2x128xf32>
    %cst_38 = arith.constant 5.000000e-01 : f32
    %118 = vector.broadcast %cst_38 : f32 to vector<2x128xf32>
    %119 = arith.addf %117, %118 : vector<2x128xf32>
    %120 = vector.extract_strided_slice %119 {offsets = [0, 0], sizes = [2, 32], strides = [1, 1]} : vector<2x128xf32> to vector<2x32xf32>
    %121 = vector.extract_strided_slice %119 {offsets = [0, 32], sizes = [2, 32], strides = [1, 1]} : vector<2x128xf32> to vector<2x32xf32>
    %122 = vector.extract_strided_slice %115 {offsets = [0, 64], sizes = [2, 32], strides = [1, 1]} : vector<2x128xf32> to vector<2x32xf32>
    %123 = vector.extract_strided_slice %119 {offsets = [0, 96], sizes = [2, 32], strides = [1, 1]} : vector<2x128xf32> to vector<2x32xf32>
    %124 = arith.mulf %121, %105 : vector<2x32xf32>
    %125 = arith.mulf %120, %122 : vector<2x32xf32>
    %126 = arith.addf %124, %125 : vector<2x32xf32>
    %127 = math.tanh %126 : vector<2x32xf32>
    %128 = arith.mulf %123, %127 : vector<2x32xf32>
    %129 = vector.extract_strided_slice %128 {offsets = [0, 0], sizes = [1, 32], strides = [1, 1]} : vector<2x32xf32> to vector<1x32xf32>
    %130 = vector.extract_strided_slice %128 {offsets = [1, 0], sizes = [1, 32], strides = [1, 1]} : vector<2x32xf32> to vector<1x32xf32>
    %131 = tpu.concatenate %129, %130 in 1 : vector<1x32xf32>, vector<1x32xf32> -> vector<1x64xf32>
    %c4 = arith.constant 4 : index
    %c0_39 = arith.constant 0 : index
    %132 = vector.load %arg11[%c4, %c0_39] : memref<8x64xf32, #tpu.memory_space<vmem>>, vector<1x64xf32>
    tpu.vector_store %arg11[%c4, %c0_39], %131 {strides = array<i32>} : memref<8x64xf32, #tpu.memory_space<vmem>>, vector<1x64xf32>,
    %133 = vector.extract_strided_slice %27 {offsets = [10, 0], sizes = [2, 128], strides = [1, 1]} : vector<16x128xf32> to vector<2x128xf32>
    %cst_40 = arith.constant dense<0.000000e+00> : vector<2x128xf32>
    %134 = tpu.matmul %128, %23, %cst_40 {dimension_numbers = #tpu.dot_dimension_numbers<[1], [0], [0], [1], [0, 0, 1, 1], [], []>} : vector<2x32xf32>, vector<32x128xf32>, vector<2x128xf32> -> vector<2x128xf32>
    %135 = arith.addf %133, %134 : vector<2x128xf32>
    %136 = math.tanh %135 : vector<2x128xf32>
    %cst_41 = arith.constant 5.000000e-01 : f32
    %137 = vector.broadcast %cst_41 : f32 to vector<2x128xf32>
    %138 = arith.mulf %137, %136 : vector<2x128xf32>
    %cst_42 = arith.constant 5.000000e-01 : f32
    %139 = vector.broadcast %cst_42 : f32 to vector<2x128xf32>
    %140 = arith.addf %138, %139 : vector<2x128xf32>
    %141 = vector.extract_strided_slice %140 {offsets = [0, 0], sizes = [2, 32], strides = [1, 1]} : vector<2x128xf32> to vector<2x32xf32>
    %142 = vector.extract_strided_slice %140 {offsets = [0, 32], sizes = [2, 32], strides = [1, 1]} : vector<2x128xf32> to vector<2x32xf32>
    %143 = vector.extract_strided_slice %136 {offsets = [0, 64], sizes = [2, 32], strides = [1, 1]} : vector<2x128xf32> to vector<2x32xf32>
    %144 = vector.extract_strided_slice %140 {offsets = [0, 96], sizes = [2, 32], strides = [1, 1]} : vector<2x128xf32> to vector<2x32xf32>
    %145 = arith.mulf %142, %126 : vector<2x32xf32>
    %146 = arith.mulf %141, %143 : vector<2x32xf32>
    %147 = arith.addf %145, %146 : vector<2x32xf32>
    %148 = math.tanh %147 : vector<2x32xf32>
    %149 = arith.mulf %144, %148 : vector<2x32xf32>
    %150 = vector.extract_strided_slice %149 {offsets = [0, 0], sizes = [1, 32], strides = [1, 1]} : vector<2x32xf32> to vector<1x32xf32>
    %151 = vector.extract_strided_slice %149 {offsets = [1, 0], sizes = [1, 32], strides = [1, 1]} : vector<2x32xf32> to vector<1x32xf32>
    %152 = tpu.concatenate %150, %151 in 1 : vector<1x32xf32>, vector<1x32xf32> -> vector<1x64xf32>
    %c5 = arith.constant 5 : index
    %c0_43 = arith.constant 0 : index
    %153 = vector.load %arg11[%c5, %c0_43] : memref<8x64xf32, #tpu.memory_space<vmem>>, vector<1x64xf32>
    tpu.vector_store %arg11[%c5, %c0_43], %152 {strides = array<i32>} : memref<8x64xf32, #tpu.memory_space<vmem>>, vector<1x64xf32>,
    %154 = vector.extract_strided_slice %27 {offsets = [12, 0], sizes = [2, 128], strides = [1, 1]} : vector<16x128xf32> to vector<2x128xf32>
    %cst_44 = arith.constant dense<0.000000e+00> : vector<2x128xf32>
    %155 = tpu.matmul %149, %23, %cst_44 {dimension_numbers = #tpu.dot_dimension_numbers<[1], [0], [0], [1], [0, 0, 1, 1], [], []>} : vector<2x32xf32>, vector<32x128xf32>, vector<2x128xf32> -> vector<2x128xf32>
    %156 = arith.addf %154, %155 : vector<2x128xf32>
    %157 = math.tanh %156 : vector<2x128xf32>
    %cst_45 = arith.constant 5.000000e-01 : f32
    %158 = vector.broadcast %cst_45 : f32 to vector<2x128xf32>
    %159 = arith.mulf %158, %157 : vector<2x128xf32>
    %cst_46 = arith.constant 5.000000e-01 : f32
    %160 = vector.broadcast %cst_46 : f32 to vector<2x128xf32>
    %161 = arith.addf %159, %160 : vector<2x128xf32>
    %162 = vector.extract_strided_slice %161 {offsets = [0, 0], sizes = [2, 32], strides = [1, 1]} : vector<2x128xf32> to vector<2x32xf32>
    %163 = vector.extract_strided_slice %161 {offsets = [0, 32], sizes = [2, 32], strides = [1, 1]} : vector<2x128xf32> to vector<2x32xf32>
    %164 = vector.extract_strided_slice %157 {offsets = [0, 64], sizes = [2, 32], strides = [1, 1]} : vector<2x128xf32> to vector<2x32xf32>
    %165 = vector.extract_strided_slice %161 {offsets = [0, 96], sizes = [2, 32], strides = [1, 1]} : vector<2x128xf32> to vector<2x32xf32>
    %166 = arith.mulf %163, %147 : vector<2x32xf32>
    %167 = arith.mulf %162, %164 : vector<2x32xf32>
    %168 = arith.addf %166, %167 : vector<2x32xf32>
    %169 = math.tanh %168 : vector<2x32xf32>
    %170 = arith.mulf %165, %169 : vector<2x32xf32>
    %171 = vector.extract_strided_slice %170 {offsets = [0, 0], sizes = [1, 32], strides = [1, 1]} : vector<2x32xf32> to vector<1x32xf32>
    %172 = vector.extract_strided_slice %170 {offsets = [1, 0], sizes = [1, 32], strides = [1, 1]} : vector<2x32xf32> to vector<1x32xf32>
    %173 = tpu.concatenate %171, %172 in 1 : vector<1x32xf32>, vector<1x32xf32> -> vector<1x64xf32>
    %c6 = arith.constant 6 : index
    %c0_47 = arith.constant 0 : index
    %174 = vector.load %arg11[%c6, %c0_47] : memref<8x64xf32, #tpu.memory_space<vmem>>, vector<1x64xf32>
    tpu.vector_store %arg11[%c6, %c0_47], %173 {strides = array<i32>} : memref<8x64xf32, #tpu.memory_space<vmem>>, vector<1x64xf32>,
    %175 = vector.extract_strided_slice %27 {offsets = [14, 0], sizes = [2, 128], strides = [1, 1]} : vector<16x128xf32> to vector<2x128xf32>
    %cst_48 = arith.constant dense<0.000000e+00> : vector<2x128xf32>
    %176 = tpu.matmul %170, %23, %cst_48 {dimension_numbers = #tpu.dot_dimension_numbers<[1], [0], [0], [1], [0, 0, 1, 1], [], []>} : vector<2x32xf32>, vector<32x128xf32>, vector<2x128xf32> -> vector<2x128xf32>
    %177 = arith.addf %175, %176 : vector<2x128xf32>
    %178 = math.tanh %177 : vector<2x128xf32>
    %cst_49 = arith.constant 5.000000e-01 : f32
    %179 = vector.broadcast %cst_49 : f32 to vector<2x128xf32>
    %180 = arith.mulf %179, %178 : vector<2x128xf32>
    %cst_50 = arith.constant 5.000000e-01 : f32
    %181 = vector.broadcast %cst_50 : f32 to vector<2x128xf32>
    %182 = arith.addf %180, %181 : vector<2x128xf32>
    %183 = vector.extract_strided_slice %182 {offsets = [0, 0], sizes = [2, 32], strides = [1, 1]} : vector<2x128xf32> to vector<2x32xf32>
    %184 = vector.extract_strided_slice %182 {offsets = [0, 32], sizes = [2, 32], strides = [1, 1]} : vector<2x128xf32> to vector<2x32xf32>
    %185 = vector.extract_strided_slice %178 {offsets = [0, 64], sizes = [2, 32], strides = [1, 1]} : vector<2x128xf32> to vector<2x32xf32>
    %186 = vector.extract_strided_slice %182 {offsets = [0, 96], sizes = [2, 32], strides = [1, 1]} : vector<2x128xf32> to vector<2x32xf32>
    %187 = arith.mulf %184, %168 : vector<2x32xf32>
    %188 = arith.mulf %183, %185 : vector<2x32xf32>
    %189 = arith.addf %187, %188 : vector<2x32xf32>
    %190 = math.tanh %189 : vector<2x32xf32>
    %191 = arith.mulf %186, %190 : vector<2x32xf32>
    %192 = vector.extract_strided_slice %191 {offsets = [0, 0], sizes = [1, 32], strides = [1, 1]} : vector<2x32xf32> to vector<1x32xf32>
    %193 = vector.extract_strided_slice %191 {offsets = [1, 0], sizes = [1, 32], strides = [1, 1]} : vector<2x32xf32> to vector<1x32xf32>
    %194 = tpu.concatenate %192, %193 in 1 : vector<1x32xf32>, vector<1x32xf32> -> vector<1x64xf32>
    %c7 = arith.constant 7 : index
    %c0_51 = arith.constant 0 : index
    %195 = vector.load %arg11[%c7, %c0_51] : memref<8x64xf32, #tpu.memory_space<vmem>>, vector<1x64xf32>
    tpu.vector_store %arg11[%c7, %c0_51], %194 {strides = array<i32>} : memref<8x64xf32, #tpu.memory_space<vmem>>, vector<1x64xf32>,
    %c0_52 = arith.constant 0 : index
    %c0_53 = arith.constant 0 : index
    %196 = vector.load %arg11[%c0_52, %c0_53] : memref<8x64xf32, #tpu.memory_space<vmem>>, vector<8x64xf32>
    %c0_54 = arith.constant 0 : index
    %c0_55 = arith.constant 0 : index
    %197 = vector.load %arg8[%c0_54, %c0_55] : memref<64x128xf32, #tpu.memory_space<vmem>>, vector<64x128xf32>
    %cst_56 = arith.constant dense<0.000000e+00> : vector<8x128xf32>
    %198 = tpu.matmul %196, %197, %cst_56 {dimension_numbers = #tpu.dot_dimension_numbers<[1], [0], [0], [1], [0, 0, 1, 1], [], []>} : vector<8x64xf32>, vector<64x128xf32>, vector<8x128xf32> -> vector<8x128xf32>
    %c0_57 = arith.constant 0 : index
    %c0_58 = arith.constant 0 : index
    %199 = vector.load %arg9[%c0_57, %c0_58] : memref<1x128xf32, #tpu.memory_space<vmem>>, vector<1x128xf32>
    %200 = vector.broadcast %199 : vector<1x128xf32> to vector<8x128xf32>
    %201 = arith.addf %198, %200 : vector<8x128xf32>
    %c0_59 = arith.constant 0 : index
    %c0_60 = arith.constant 0 : index
    %202 = vector.load %arg10[%c0_59, %c0_60] : memref<8x128xf32, #tpu.memory_space<vmem>>, vector<8x128xf32>
    tpu.vector_store %arg10[%c0_59, %c0_60], %201 {strides = array<i32>} : memref<8x128xf32, #tpu.memory_space<vmem>>, vector<8x128xf32>,
    return
  }
}

</mosaic_0001>

<llo_original>
// kernel: decoder_forward.1
$region0: #{decoder_forward.1}
  #allocation0 [shape = 'u32[]', space=smem, size = 0x4, offset = 0x4, fixed_abs, tag = 'smem constant byte address 0x4 - core index']
  #allocation1 [shape = 'u32[144,128]{1,0:T(1,128)}', space=vmem, size = 0x12000, scoped, tag = 'internal scratch']
  #allocation2 [shape = 'f32[8,64]{1,0:T(8,128)}', space=vmem, size = 0x1000, scoped, tag = 'scratch operand']
  %s0 = inlined_call_operand.vmem [shape: s32[16,1], index: 0, kind: input, shape index: {}]
  %s1 = inlined_call_operand.hbm [shape: f32[2,8], index: 1, kind: input, shape index: {}]
  %s2 = inlined_call_operand.hbm [shape: f32[2,8], index: 2, kind: input, shape index: {}]
  %s3 = inlined_call_operand.vmem [shape: f32[64,16], index: 3, kind: input, shape index: {}]
  %s4 = inlined_call_operand.vmem [shape: f32[16,32], index: 4, kind: input, shape index: {}]
  %s5 = inlined_call_operand.hbm [shape: f32[1,32], index: 5, kind: input, shape index: {}]
  %s6 = inlined_call_operand.vmem [shape: f32[48,128], index: 6, kind: input, shape index: {}]
  %s7 = inlined_call_operand.hbm [shape: f32[1,128], index: 7, kind: input, shape index: {}]
  %s8 = inlined_call_operand.vmem [shape: f32[64,128], index: 8, kind: input, shape index: {}]
  %s9 = inlined_call_operand.hbm [shape: f32[1,128], index: 9, kind: input, shape index: {}]
  %s10 = inlined_call_operand.vmem [shape: f32[8,128], index: 10, kind: output, shape index: {}]
  %s11 = sld [smem:[#allocation0]]
  $region70: #{decoder_forward.1} parent=0
    _
  %s13 = ssub.s32 1, %s11
  %s14 = scalar_select 0, %s13, %s11
  $region1: #{decoder_forward.1} parent=0
    #allocation3 [shape = 'u8[1024]{0}', space=vmem, size = 0x400, scoped, tag = 'input window, operand 1, single buffered']
    #allocation4 [shape = 's32[1]{0}', space=sflag, size = 0x4, scoped, tag = 'scoped memory for decoder_forward.1']
    #allocation5 [shape = 'u8[1024]{0}', space=vmem, size = 0x400, scoped, tag = 'input window, operand 2, single buffered']
    #allocation6 [shape = 's32[1]{0}', space=sflag, size = 0x4, scoped, tag = 'scoped memory for decoder_forward.1']
    #allocation7 [shape = 'u8[512]{0}', space=vmem, size = 0x400, scoped, tag = 'input window, operand 5, single buffered']
    #allocation8 [shape = 'u8[512]{0}', space=vmem, size = 0x400, scoped, tag = 'input window, operand 7, single buffered']
    #allocation9 [shape = 's32[1]{0}', space=sflag, size = 0x4, scoped, tag = 'scoped memory for decoder_forward.1']
    #allocation10 [shape = 'u8[512]{0}', space=vmem, size = 0x400, scoped, tag = 'input window, operand 9, single buffered']
    %15 = vsyncpa [#allocation4], 0
    %16 = vsyncpa [#allocation6], 0
    %17 = vsyncpa [#allocation9], 0
    // Predicated region
    $region2: #{decoder_forward.1} parent=1 // pred_check
      _
    $region3: #{decoder_forward.1} parent=1 // pred_check_branch
      %19 = sbr.rel (0) target = $region5
    $region4: #{decoder_forward.1} parent=1 // pred_region
      _
    $region5: #{decoder_forward.1} parent=1 // pred_fallthru
      _
    // Predicated region
    $region6: #{decoder_forward.1} parent=1 // pred_check
      _
    $region7: #{decoder_forward.1} parent=1 // pred_check_branch
      %21 = sbr.rel (0) target = $region9
    $region8: #{decoder_forward.1} parent=1 // pred_region
      %s23 = ssub.s32 32, 32
      %24 = vsyncadd [#allocation4], %s23
      %s26 = sshll.u32 [#allocation3], 4
      %s27 = int_to_ptr.vmem [resolvable:$true] %s26
      %29 = dma.hbm_to_vmem [thread:$0]  %s1, 32, %s27, [#allocation4]
    $region9: #{decoder_forward.1} parent=1 // pred_fallthru
      _
    // Predicated region
    $region10: #{decoder_forward.1} parent=1 // pred_check
      _
    $region11: #{decoder_forward.1} parent=1 // pred_check_branch
      %31 = sbr.rel (0) target = $region13
    $region12: #{decoder_forward.1} parent=1 // pred_region
      %s33 = ssub.s32 32, 32
      %34 = vsyncadd [#allocation6], %s33
      %s36 = sshll.u32 [#allocation5], 4
      %s37 = int_to_ptr.vmem [resolvable:$true] %s36
      %39 = dma.hbm_to_vmem [thread:$0]  %s2, 32, %s37, [#allocation6]
    $region13: #{decoder_forward.1} parent=1 // pred_fallthru
      _
    // Predicated region
    $region14: #{decoder_forward.1} parent=1 // pred_check
      _
    $region15: #{decoder_forward.1} parent=1 // pred_check_branch
      %41 = sbr.rel (0) target = $region17
    $region16: #{decoder_forward.1} parent=1 // pred_region
      _
    $region17: #{decoder_forward.1} parent=1 // pred_fallthru
      _
    // Predicated region
    $region18: #{decoder_forward.1} parent=1 // pred_check
      _
    $region19: #{decoder_forward.1} parent=1 // pred_check_branch
      %43 = sbr.rel (0) target = $region21
    $region20: #{decoder_forward.1} parent=1 // pred_region
      _
    $region21: #{decoder_forward.1} parent=1 // pred_fallthru
      _
    // Predicated region
    $region22: #{decoder_forward.1} parent=1 // pred_check
      _
    $region23: #{decoder_forward.1} parent=1 // pred_check_branch
      %45 = sbr.rel (0) target = $region25
    $region24: #{decoder_forward.1} parent=1 // pred_region
      %s47 = ssub.s32 16, 16
      %48 = vsyncadd [#allocation6], %s47
      %s50 = sshll.u32 [#allocation7], 4
      %s51 = int_to_ptr.vmem [resolvable:$true] %s50
      %53 = dma.hbm_to_vmem [thread:$0]  %s5, 16, %s51, [#allocation6]
    $region25: #{decoder_forward.1} parent=1 // pred_fallthru
      _
    // Predicated region
    $region26: #{decoder_forward.1} parent=1 // pred_check
      _
    $region27: #{decoder_forward.1} parent=1 // pred_check_branch
      %55 = sbr.rel (0) target = $region29
    $region28: #{decoder_forward.1} parent=1 // pred_region
      _
    $region29: #{decoder_forward.1} parent=1 // pred_fallthru
      _
    // Predicated region
    $region30: #{decoder_forward.1} parent=1 // pred_check
      _
    $region31: #{decoder_forward.1} parent=1 // pred_check_branch
      %57 = sbr.rel (0) target = $region33
    $region32: #{decoder_forward.1} parent=1 // pred_region
      %s59 = ssub.s32 16, 16
      %60 = vsyncadd [#allocation9], %s59
      %s62 = sshll.u32 [#allocation8], 4
      %s63 = int_to_ptr.vmem [resolvable:$true] %s62
      %65 = dma.hbm_to_vmem [thread:$0]  %s7, 16, %s63, [#allocation9]
    $region33: #{decoder_forward.1} parent=1 // pred_fallthru
      _
    // Predicated region
    $region34: #{decoder_forward.1} parent=1 // pred_check
      _
    $region35: #{decoder_forward.1} parent=1 // pred_check_branch
      %67 = sbr.rel (0) target = $region37
    $region36: #{decoder_forward.1} parent=1 // pred_region
      _
    $region37: #{decoder_forward.1} parent=1 // pred_fallthru
      _
    // Predicated region
    $region38: #{decoder_forward.1} parent=1 // pred_check
      _
    $region39: #{decoder_forward.1} parent=1 // pred_check_branch
      %69 = sbr.rel (0) target = $region41
    $region40: #{decoder_forward.1} parent=1 // pred_region
      %s71 = ssub.s32 16, 16
      %72 = vsyncadd [#allocation9], %s71
      %s74 = sshll.u32 [#allocation10], 4
      %s75 = int_to_ptr.vmem [resolvable:$true] %s74
      %77 = dma.hbm_to_vmem [thread:$0]  %s9, 16, %s75, [#allocation9]
    $region41: #{decoder_forward.1} parent=1 // pred_fallthru
      _
    // Predicated region
    $region42: #{decoder_forward.1} parent=1 // pred_check
      _
    $region43: #{decoder_forward.1} parent=1 // pred_check_branch
      %79 = sbr.rel (0) target = $region45
    $region44: #{decoder_forward.1} parent=1 // pred_region
      %80 = dma.done [#allocation4], 32
    $region45: #{decoder_forward.1} parent=1 // pred_fallthru
      _
    // Predicated region
    $region46: #{decoder_forward.1} parent=1 // pred_check
      _
    $region47: #{decoder_forward.1} parent=1 // pred_check_branch
      %82 = sbr.rel (0) target = $region49
    $region48: #{decoder_forward.1} parent=1 // pred_region
      %83 = dma.done [#allocation6], 32
    $region49: #{decoder_forward.1} parent=1 // pred_fallthru
      _
    // Predicated region
    $region50: #{decoder_forward.1} parent=1 // pred_check
      _
    $region51: #{decoder_forward.1} parent=1 // pred_check_branch
      %85 = sbr.rel (0) target = $region53
    $region52: #{decoder_forward.1} parent=1 // pred_region
      %86 = dma.done [#allocation6], 16
    $region53: #{decoder_forward.1} parent=1 // pred_fallthru
      _
    // Predicated region
    $region54: #{decoder_forward.1} parent=1 // pred_check
      _
    $region55: #{decoder_forward.1} parent=1 // pred_check_branch
      %88 = sbr.rel (0) target = $region57
    $region56: #{decoder_forward.1} parent=1 // pred_region
      %89 = dma.done [#allocation9], 16
    $region57: #{decoder_forward.1} parent=1 // pred_fallthru
      _
    // Predicated region
    $region58: #{decoder_forward.1} parent=1 // pred_check
      _
    $region59: #{decoder_forward.1} parent=1 // pred_check_branch
      %91 = sbr.rel (0) target = $region61
    $region60: #{decoder_forward.1} parent=1 // pred_region
      %92 = dma.done [#allocation9], 16
    $region61: #{decoder_forward.1} parent=1 // pred_fallthru
      _
    %v93 = vld [vmem:[%s4] sm:$0xff]
    %v94 = vld [vmem:[%s4 + $0x8] sm:$0xff]
    %v95 = vld [vmem:[#allocation3] sm:$0x3]
    %v96 = vld [vmem:[#allocation5] sm:$0x3]
    %vm97 = vcmask 64512
    %v99 = vsel %vm97, %v96, 0
    %101 = vmatprep.subr.mxu0 0.0
    %102 = vmatpush1.msra.mxu0 0.0
    %103 = vmatprep.subr.mxu0 0.0
    %104 = vmatpush1.msra.mxu0 0.0
    %105 = vmatprep.subr.mxu0 0.0
    %106 = vmatpush1.msra.mxu0 0.0
    %107 = vmatprep.subr.mxu0 0.0
    %108 = vmatpush1.msra.mxu0 0.0
    %109 = vmatprep.subr.mxu0 0.0
    %110 = vmatpush1.msra.mxu0 0.0
    %111 = vmatprep.subr.mxu0 0.0
    %112 = vmatpush1.msra.mxu0 0.0
    %113 = vmatprep.subr.mxu0 0.0
    %114 = vmatpush1.msra.mxu0 0.0
    %115 = vmatprep.subr.mxu0 0.0
    %116 = vmatpush1.msra.mxu0 0.0
    %117 = vmatprep.subr.mxu0 0.0
    %118 = vmatpush1.msra.mxu0 0.0
    %119 = vmatprep.subr.mxu0 0.0
    %120 = vmatpush1.msra.mxu0 0.0
    %121 = vmatprep.subr.mxu0 0.0
    %122 = vmatpush1.msra.mxu0 0.0
    %123 = vmatprep.subr.mxu0 0.0
    %124 = vmatpush1.msra.mxu0 0.0
    %125 = vmatprep.subr.mxu0 0.0
    %126 = vmatpush1.msra.mxu0 0.0
    %127 = vmatprep.subr.mxu0 0.0
    %128 = vmatpush1.msra.mxu0 0.0
    %129 = vmatprep.subr.mxu0 0.0
    %130 = vmatpush1.msra.mxu0 0.0
    %131 = vmatprep.subr.mxu0 0.0
    %132 = vmatpush1.msra.mxu0 %v94
    %133 = vmatprep.subr.mxu0 0.0
    %134 = vmatpush2.msra.mxu0 0.0
    %135 = vmatprep.subr.mxu0 0.0
    %136 = vmatpush2.msra.mxu0 0.0
    %137 = vmatprep.subr.mxu0 0.0
    %138 = vmatpush2.msra.mxu0 0.0
    %139 = vmatprep.subr.mxu0 0.0
    %140 = vmatpush2.msra.mxu0 0.0
    %141 = vmatprep.subr.mxu0 0.0
    %142 = vmatpush2.msra.mxu0 0.0
    %143 = vmatprep.subr.mxu0 0.0
    %144 = vmatpush2.msra.mxu0 0.0
    %145 = vmatprep.subr.mxu0 0.0
    %146 = vmatpush2.msra.mxu0 0.0
    %147 = vmatprep.subr.mxu0 0.0
    %148 = vmatpush2.msra.mxu0 0.0
    %149 = vmatprep.subr.mxu0 0.0
    %150 = vmatpush2.msra.mxu0 0.0
    %151 = vmatprep.subr.mxu0 0.0
    %152 = vmatpush2.msra.mxu0 0.0
    %153 = vmatprep.subr.mxu0 0.0
    %154 = vmatpush2.msra.mxu0 0.0
    %155 = vmatprep.subr.mxu0 0.0
    %156 = vmatpush2.msra.mxu0 0.0
    %157 = vmatprep.subr.mxu0 0.0
    %158 = vmatpush2.msra.mxu0 0.0
    %159 = vmatprep.subr.mxu0 0.0
    %160 = vmatpush2.msra.mxu0 0.0
    %161 = vmatprep.subr.mxu0 0.0
    %162 = vmatpush2.msra.mxu0 0.0
    %163 = vmatprep.subr.mxu0 0.0
    %164 = vmatpush2.msra.mxu0 0.0
    %165 = vmatprep.mubr.f32.mxu0 0.0
    %166 = vmatmul.mubr.f32.gmra.mxu0 %v99
    %v167 = vpop.f32.mrf.mxu0
    %v168 = vadd.f32 0.0, %v167
    %v169 = vpop.f32.mrf.mxu0
    %170 = vdwg.mxu0
    %v172 = vsel %vm97, %v95, 0
    %174 = vmatprep.subr.mxu0 0.0
    %175 = vmatpush1.msra.mxu0 0.0
    %176 = vmatprep.subr.mxu0 0.0
    %177 = vmatpush1.msra.mxu0 0.0
    %178 = vmatprep.subr.mxu0 0.0
    %179 = vmatpush1.msra.mxu0 0.0
    %180 = vmatprep.subr.mxu0 0.0
    %181 = vmatpush1.msra.mxu0 0.0
    %182 = vmatprep.subr.mxu0 0.0
    %183 = vmatpush1.msra.mxu0 0.0
    %184 = vmatprep.subr.mxu0 0.0
    %185 = vmatpush1.msra.mxu0 0.0
    %186 = vmatprep.subr.mxu0 0.0
    %187 = vmatpush1.msra.mxu0 0.0
    %188 = vmatprep.subr.mxu0 0.0
    %189 = vmatpush1.msra.mxu0 0.0
    %190 = vmatprep.subr.mxu0 0.0
    %191 = vmatpush1.msra.mxu0 0.0
    %192 = vmatprep.subr.mxu0 0.0
    %193 = vmatpush1.msra.mxu0 0.0
    %194 = vmatprep.subr.mxu0 0.0
    %195 = vmatpush1.msra.mxu0 0.0
    %196 = vmatprep.subr.mxu0 0.0
    %197 = vmatpush1.msra.mxu0 0.0
    %198 = vmatprep.subr.mxu0 0.0
    %199 = vmatpush1.msra.mxu0 0.0
    %200 = vmatprep.subr.mxu0 0.0
    %201 = vmatpush1.msra.mxu0 0.0
    %202 = vmatprep.subr.mxu0 0.0
    %203 = vmatpush1.msra.mxu0 0.0
    %204 = vmatprep.subr.mxu0 0.0
    %205 = vmatpush1.msra.mxu0 %v93
    %206 = vmatprep.subr.mxu0 0.0
    %207 = vmatpush2.msra.mxu0 0.0
    %208 = vmatprep.subr.mxu0 0.0
    %209 = vmatpush2.msra.mxu0 0.0
    %210 = vmatprep.subr.mxu0 0.0
    %211 = vmatpush2.msra.mxu0 0.0
    %212 = vmatprep.subr.mxu0 0.0
    %213 = vmatpush2.msra.mxu0 0.0
    %214 = vmatprep.subr.mxu0 0.0
    %215 = vmatpush2.msra.mxu0 0.0
    %216 = vmatprep.subr.mxu0 0.0
    %217 = vmatpush2.msra.mxu0 0.0
    %218 = vmatprep.subr.mxu0 0.0
    %219 = vmatpush2.msra.mxu0 0.0
    %220 = vmatprep.subr.mxu0 0.0
    %221 = vmatpush2.msra.mxu0 0.0
    %222 = vmatprep.subr.mxu0 0.0
    %223 = vmatpush2.msra.mxu0 0.0
    %224 = vmatprep.subr.mxu0 0.0
    %225 = vmatpush2.msra.mxu0 0.0
    %226 = vmatprep.subr.mxu0 0.0
    %227 = vmatpush2.msra.mxu0 0.0
    %228 = vmatprep.subr.mxu0 0.0
    %229 = vmatpush2.msra.mxu0 0.0
    %230 = vmatprep.subr.mxu0 0.0
    %231 = vmatpush2.msra.mxu0 0.0
    %232 = vmatprep.subr.mxu0 0.0
    %233 = vmatpush2.msra.mxu0 0.0
    %234 = vmatprep.subr.mxu0 0.0
    %235 = vmatpush2.msra.mxu0 0.0
    %236 = vmatprep.subr.mxu0 0.0
    %237 = vmatpush2.msra.mxu0 0.0
    %238 = vmatprep.mubr.f32.mxu0 0.0
    %239 = vmatmul.mubr.f32.gmra.mxu0 %v172
    %v240 = vpop.f32.mrf.mxu0
    %v241 = vadd.f32 %v168, %v240
    %v242 = vpop.f32.mrf.mxu0
    %243 = vdwg.mxu0
    %v244 = vld [vmem:[#allocation7] sm:$0x1]
    %v246 = vlaneseq
    %v247 = vshrl.u32 %v246, 7
    %v248 = vsub.s32 0, %v247
    %v249 = vrot.slane %v244, %v248
    %v251 = vadd.f32 %v241, %v249
    %v252 = vtanh.pop %v251
    %v253 = vld [vmem:[%s0] sm:$0xff]
    %v254 = vld [vmem:[%s0 + $0x8] sm:$0xff]
    %v255 = vlaneseq
    %v256 = vand.u32 %v255, 127
    %257 = vset.pattern.permute.xlu0 0
    %258 = vperm.xlu0 %257, %v253
    %v259 = vpop.permute.xlu0 %258
    %260 = vset.pattern.permute.xlu0 0
    %261 = vperm.xlu0 %260, %v254
    %v262 = vpop.permute.xlu0 %261
    %vm263 = vcmp.eq.s32.totalorder %v259, %v256
    %vm264 = vcmp.eq.s32.totalorder %v262, %v256
    %v265 = vsel %vm263, 1, 0
    %v266 = vsel %vm264, 1, 0
    %v267 = vcvt.s32.f32 %v265
    %v268 = vcvt.s32.f32 %v266
    %v269 = vld [vmem:[%s3] sm:$0xff]
    %v270 = vld [vmem:[%s3 + $0x8] sm:$0xff]
    %v271 = vld [vmem:[%s3 + $0x10] sm:$0xff]
    %v272 = vld [vmem:[%s3 + $0x18] sm:$0xff]
    %v273 = vld [vmem:[%s3 + $0x20] sm:$0xff]
    %v274 = vld [vmem:[%s3 + $0x28] sm:$0xff]
    %v275 = vld [vmem:[%s3 + $0x30] sm:$0xff]
    %v276 = vld [vmem:[%s3 + $0x38] sm:$0xff]
    %vm277 = vcmask 523264
    %v279 = vsel %vm277, %v267, 0
    %v282 = vsel %vm277, %v268, 0
    %284 = vmatprep.subr.mxu0 0.0
    %285 = vmatpush1.msra.mxu0 0.0
    %286 = vmatprep.subr.mxu0 0.0
    %287 = vmatpush1.msra.mxu0 0.0
    %288 = vmatprep.subr.mxu0 0.0
    %289 = vmatpush1.msra.mxu0 0.0
    %290 = vmatprep.subr.mxu0 0.0
    %291 = vmatpush1.msra.mxu0 0.0
    %292 = vmatprep.subr.mxu0 0.0
    %293 = vmatpush1.msra.mxu0 0.0
    %294 = vmatprep.subr.mxu0 0.0
    %295 = vmatpush1.msra.mxu0 0.0
    %296 = vmatprep.subr.mxu0 0.0
    %297 = vmatpush1.msra.mxu0 0.0
    %298 = vmatprep.subr.mxu0 0.0
    %299 = vmatpush1.msra.mxu0 0.0
    %300 = vmatprep.subr.mxu0 0.0
    %301 = vmatpush1.msra.mxu0 %v276
    %302 = vmatprep.subr.mxu0 0.0
    %303 = vmatpush1.msra.mxu0 %v275
    %304 = vmatprep.subr.mxu0 0.0
    %305 = vmatpush1.msra.mxu0 %v274
    %306 = vmatprep.subr.mxu0 0.0
    %307 = vmatpush1.msra.mxu0 %v273
    %308 = vmatprep.subr.mxu0 0.0
    %309 = vmatpush1.msra.mxu0 %v272
    %310 = vmatprep.subr.mxu0 0.0
    %311 = vmatpush1.msra.mxu0 %v271
    %312 = vmatprep.subr.mxu0 0.0
    %313 = vmatpush1.msra.mxu0 %v270
    %314 = vmatprep.subr.mxu0 0.0
    %315 = vmatpush1.msra.mxu0 %v269
    %316 = vmatprep.subr.mxu0 0.0
    %317 = vmatpush2.msra.mxu0 0.0
    %318 = vmatprep.subr.mxu0 0.0
    %319 = vmatpush2.msra.mxu0 0.0
    %320 = vmatprep.subr.mxu0 0.0
    %321 = vmatpush2.msra.mxu0 0.0
    %322 = vmatprep.subr.mxu0 0.0
    %323 = vmatpush2.msra.mxu0 0.0
    %324 = vmatprep.subr.mxu0 0.0
    %325 = vmatpush2.msra.mxu0 0.0
    %326 = vmatprep.subr.mxu0 0.0
    %327 = vmatpush2.msra.mxu0 0.0
    %328 = vmatprep.subr.mxu0 0.0
    %329 = vmatpush2.msra.mxu0 0.0
    %330 = vmatprep.subr.mxu0 0.0
    %331 = vmatpush2.msra.mxu0 0.0
    %332 = vmatprep.subr.mxu0 0.0
    %333 = vmatpush2.msra.mxu0 0.0
    %334 = vmatprep.subr.mxu0 0.0
    %335 = vmatpush2.msra.mxu0 0.0
    %336 = vmatprep.subr.mxu0 0.0
    %337 = vmatpush2.msra.mxu0 0.0
    %338 = vmatprep.subr.mxu0 0.0
    %339 = vmatpush2.msra.mxu0 0.0
    %340 = vmatprep.subr.mxu0 0.0
    %341 = vmatpush2.msra.mxu0 0.0
    %342 = vmatprep.subr.mxu0 0.0
    %343 = vmatpush2.msra.mxu0 0.0
    %344 = vmatprep.subr.mxu0 0.0
    %345 = vmatpush2.msra.mxu0 0.0
    %346 = vmatprep.subr.mxu0 0.0
    %347 = vmatpush2.msra.mxu0 0.0
    %348 = vmatprep.mubr.f32.mxu0 0.0
    %349 = vmatmul.mubr.f32.gmra.mxu0 %v279
    %v350 = vpop.f32.mrf.mxu0
    %v351 = vadd.f32 0.0, %v350
    %v352 = vpop.f32.mrf.mxu0
    %353 = vmatprep.mubr.f32.mxu0 0.0
    %354 = vmatmul.mubr.f32.gmra.mxu0 %v282
    %v355 = vpop.f32.mrf.mxu0
    %v356 = vadd.f32 0.0, %v355
    %v357 = vpop.f32.mrf.mxu0
    %358 = vdwg.mxu0
    %v359 = vld [vmem:[%s6] sm:$0xff]
    %v360 = vld [vmem:[%s6 + $0x8] sm:$0xff]
    %v361 = vld [vmem:[%s6 + $0x10] sm:$0xff]
    %v362 = vld [vmem:[%s6 + $0x18] sm:$0xff]
    %v363 = vld [vmem:[%s6 + $0x20] sm:$0xff]
    %v364 = vld [vmem:[%s6 + $0x28] sm:$0xff]
    %v365 = vld [vmem:[#allocation8] sm:$0x1]
    %v367 = vlaneseq
    %v368 = vshrl.u32 %v367, 7
    %v369 = vsub.s32 0, %v368
    %v370 = vrot.slane %v365, %v369
    %vm372 = vcmask 130048
    %v374 = vsel %vm372, %v351, 0
    %v377 = vsel %vm372, %v356, 0
    %379 = vmatprep.subr.mxu0 0.0
    %380 = vmatpush1.msra.mxu0 0.0
    %381 = vmatprep.subr.mxu0 0.0
    %382 = vmatpush1.msra.mxu0 0.0
    %383 = vmatprep.subr.mxu0 0.0
    %384 = vmatpush1.msra.mxu0 0.0
    %385 = vmatprep.subr.mxu0 0.0
    %386 = vmatpush1.msra.mxu0 0.0
    %387 = vmatprep.subr.mxu0 0.0
    %388 = vmatpush1.msra.mxu0 0.0
    %389 = vmatprep.subr.mxu0 0.0
    %390 = vmatpush1.msra.mxu0 0.0
    %391 = vmatprep.subr.mxu0 0.0
    %392 = vmatpush1.msra.mxu0 0.0
    %393 = vmatprep.subr.mxu0 0.0
    %394 = vmatpush1.msra.mxu0 0.0
    %395 = vmatprep.subr.mxu0 0.0
    %396 = vmatpush1.msra.mxu0 0.0
    %397 = vmatprep.subr.mxu0 0.0
    %398 = vmatpush1.msra.mxu0 0.0
    %399 = vmatprep.subr.mxu0 0.0
    %400 = vmatpush1.msra.mxu0 0.0
    %401 = vmatprep.subr.mxu0 0.0
    %402 = vmatpush1.msra.mxu0 0.0
    %403 = vmatprep.subr.mxu0 0.0
    %404 = vmatpush1.msra.mxu0 0.0
    %405 = vmatprep.subr.mxu0 0.0
    %406 = vmatpush1.msra.mxu0 0.0
    %407 = vmatprep.subr.mxu0 0.0
    %408 = vmatpush1.msra.mxu0 %v360
    %409 = vmatprep.subr.mxu0 0.0
    %410 = vmatpush1.msra.mxu0 %v359
    %411 = vmatprep.subr.mxu0 0.0
    %412 = vmatpush2.msra.mxu0 0.0
    %413 = vmatprep.subr.mxu0 0.0
    %414 = vmatpush2.msra.mxu0 0.0
    %415 = vmatprep.subr.mxu0 0.0
    %416 = vmatpush2.msra.mxu0 0.0
    %417 = vmatprep.subr.mxu0 0.0
    %418 = vmatpush2.msra.mxu0 0.0
    %419 = vmatprep.subr.mxu0 0.0
    %420 = vmatpush2.msra.mxu0 0.0
    %421 = vmatprep.subr.mxu0 0.0
    %422 = vmatpush2.msra.mxu0 0.0
    %423 = vmatprep.subr.mxu0 0.0
    %424 = vmatpush2.msra.mxu0 0.0
    %425 = vmatprep.subr.mxu0 0.0
    %426 = vmatpush2.msra.mxu0 0.0
    %427 = vmatprep.subr.mxu0 0.0
    %428 = vmatpush2.msra.mxu0 0.0
    %429 = vmatprep.subr.mxu0 0.0
    %430 = vmatpush2.msra.mxu0 0.0
    %431 = vmatprep.subr.mxu0 0.0
    %432 = vmatpush2.msra.mxu0 0.0
    %433 = vmatprep.subr.mxu0 0.0
    %434 = vmatpush2.msra.mxu0 0.0
    %435 = vmatprep.subr.mxu0 0.0
    %436 = vmatpush2.msra.mxu0 0.0
    %437 = vmatprep.subr.mxu0 0.0
    %438 = vmatpush2.msra.mxu0 0.0
    %439 = vmatprep.subr.mxu0 0.0
    %440 = vmatpush2.msra.mxu0 0.0
    %441 = vmatprep.subr.mxu0 0.0
    %442 = vmatpush2.msra.mxu0 0.0
    %443 = vmatprep.mubr.f32.mxu0 0.0
    %444 = vmatmul.mubr.f32.gmra.mxu0 %v374
    %v445 = vpop.f32.mrf.mxu0
    %v446 = vadd.f32 %v370, %v445
    %v447 = vpop.f32.mrf.mxu0
    %448 = vmatprep.mubr.f32.mxu0 0.0
    %449 = vmatmul.mubr.f32.gmra.mxu0 %v377
    %v450 = vpop.f32.mrf.mxu0
    %v451 = vadd.f32 %v370, %v450
    %v452 = vpop.f32.mrf.mxu0
    %453 = vdwg.mxu0
    %vm454 = vcmask 261120
    %v456 = vsel %vm454, %v252, 0
    %458 = vmatprep.subr.mxu0 0.0
    %459 = vmatpush1.msra.mxu0 0.0
    %460 = vmatprep.subr.mxu0 0.0
    %461 = vmatpush1.msra.mxu0 0.0
    %462 = vmatprep.subr.mxu0 0.0
    %463 = vmatpush1.msra.mxu0 0.0
    %464 = vmatprep.subr.mxu0 0.0
    %465 = vmatpush1.msra.mxu0 0.0
    %466 = vmatprep.subr.mxu0 0.0
    %467 = vmatpush1.msra.mxu0 0.0
    %468 = vmatprep.subr.mxu0 0.0
    %469 = vmatpush1.msra.mxu0 0.0
    %470 = vmatprep.subr.mxu0 0.0
    %471 = vmatpush1.msra.mxu0 0.0
    %472 = vmatprep.subr.mxu0 0.0
    %473 = vmatpush1.msra.mxu0 0.0
    %474 = vmatprep.subr.mxu0 0.0
    %475 = vmatpush1.msra.mxu0 0.0
    %476 = vmatprep.subr.mxu0 0.0
    %477 = vmatpush1.msra.mxu0 0.0
    %478 = vmatprep.subr.mxu0 0.0
    %479 = vmatpush1.msra.mxu0 0.0
    %480 = vmatprep.subr.mxu0 0.0
    %481 = vmatpush1.msra.mxu0 0.0
    %482 = vmatprep.subr.mxu0 0.0
    %483 = vmatpush1.msra.mxu0 %v364
    %484 = vmatprep.subr.mxu0 0.0
    %485 = vmatpush1.msra.mxu0 %v363
    %486 = vmatprep.subr.mxu0 0.0
    %487 = vmatpush1.msra.mxu0 %v362
    %488 = vmatprep.subr.mxu0 0.0
    %489 = vmatpush1.msra.mxu0 %v361
    %490 = vmatprep.subr.mxu0 0.0
    %491 = vmatpush2.msra.mxu0 0.0
    %492 = vmatprep.subr.mxu0 0.0
    %493 = vmatpush2.msra.mxu0 0.0
    %494 = vmatprep.subr.mxu0 0.0
    %495 = vmatpush2.msra.mxu0 0.0
    %496 = vmatprep.subr.mxu0 0.0
    %497 = vmatpush2.msra.mxu0 0.0
    %498 = vmatprep.subr.mxu0 0.0
    %499 = vmatpush2.msra.mxu0 0.0
    %500 = vmatprep.subr.mxu0 0.0
    %501 = vmatpush2.msra.mxu0 0.0
    %502 = vmatprep.subr.mxu0 0.0
    %503 = vmatpush2.msra.mxu0 0.0
    %504 = vmatprep.subr.mxu0 0.0
    %505 = vmatpush2.msra.mxu0 0.0
    %506 = vmatprep.subr.mxu0 0.0
    %507 = vmatpush2.msra.mxu0 0.0
    %508 = vmatprep.subr.mxu0 0.0
    %509 = vmatpush2.msra.mxu0 0.0
    %510 = vmatprep.subr.mxu0 0.0
    %511 = vmatpush2.msra.mxu0 0.0
    %512 = vmatprep.subr.mxu0 0.0
    %513 = vmatpush2.msra.mxu0 0.0
    %514 = vmatprep.subr.mxu0 0.0
    %515 = vmatpush2.msra.mxu0 0.0
    %516 = vmatprep.subr.mxu0 0.0
    %517 = vmatpush2.msra.mxu0 0.0
    %518 = vmatprep.subr.mxu0 0.0
    %519 = vmatpush2.msra.mxu0 0.0
    %520 = vmatprep.subr.mxu0 0.0
    %521 = vmatpush2.msra.mxu0 0.0
    %522 = vmatprep.mubr.f32.mxu0 0.0
    %523 = vmatmul.mubr.f32.gmra.mxu0 %v456
    %v524 = vpop.f32.mrf.mxu0
    %v525 = vadd.f32 0.0, %v524
    %v526 = vpop.f32.mrf.mxu0
    %527 = vdwg.mxu0
    %v528 = vadd.f32 %v446, %v525
    %v529 = vtanh.pop %v528
    %v530 = vmul.f32 %v529, 0.5
    %v531 = vadd.f32 %v530, 0.5
    %v532 = vmul.f32 %v531, 0.0
    %534 = vrot.lane.b32.xlu0 %v529, 64
    %v535 = vpop.permute.xlu0 %534
    %v537 = vmul.f32 %v531, %v535
    %539 = vrot.lane.b32.xlu0 %v537, 32
    %v540 = vpop.permute.xlu0 %539
    %v542 = vadd.f32 %v532, %v540
    %v543 = vtanh.pop %v542
    %545 = vrot.lane.b32.xlu0 %v543, 64
    %v546 = vpop.permute.xlu0 %545
    %v548 = vmul.f32 %v531, %v546
    %550 = vrot.lane.b32.xlu0 %v548, 32
    %v551 = vpop.permute.xlu0 %550
    %v553 = vrot.slane %v548, 1
    %554 = vrot.lane.b32.xlu0 %v553, 64
    %v555 = vpop.permute.xlu0 %554
    %v557 = vsel %vm454, %v551, %v555
    %vm558 = vcmask 516096
    %559 = vst.msk [vmem:[#allocation2] sm:$0x1] %vm558, %v557
    %v560 = vsel %vm454, %v551, 0
    %562 = vmatprep.subr.mxu0 0.0
    %563 = vmatpush1.msra.mxu0 0.0
    %564 = vmatprep.subr.mxu0 0.0
    %565 = vmatpush1.msra.mxu0 0.0
    %566 = vmatprep.subr.mxu0 0.0
    %567 = vmatpush1.msra.mxu0 0.0
    %568 = vmatprep.subr.mxu0 0.0
    %569 = vmatpush1.msra.mxu0 0.0
    %570 = vmatprep.subr.mxu0 0.0
    %571 = vmatpush1.msra.mxu0 0.0
    %572 = vmatprep.subr.mxu0 0.0
    %573 = vmatpush1.msra.mxu0 0.0
    %574 = vmatprep.subr.mxu0 0.0
    %575 = vmatpush1.msra.mxu0 0.0
    %576 = vmatprep.subr.mxu0 0.0
    %577 = vmatpush1.msra.mxu0 0.0
    %578 = vmatprep.subr.mxu0 0.0
    %579 = vmatpush1.msra.mxu0 0.0
    %580 = vmatprep.subr.mxu0 0.0
    %581 = vmatpush1.msra.mxu0 0.0
    %582 = vmatprep.subr.mxu0 0.0
    %583 = vmatpush1.msra.mxu0 0.0
    %584 = vmatprep.subr.mxu0 0.0
    %585 = vmatpush1.msra.mxu0 0.0
    %586 = vmatprep.subr.mxu0 0.0
    %587 = vmatpush1.msra.mxu0 %v364
    %588 = vmatprep.subr.mxu0 0.0
    %589 = vmatpush1.msra.mxu0 %v363
    %590 = vmatprep.subr.mxu0 0.0
    %591 = vmatpush1.msra.mxu0 %v362
    %592 = vmatprep.subr.mxu0 0.0
    %593 = vmatpush1.msra.mxu0 %v361
    %594 = vmatprep.subr.mxu0 0.0
    %595 = vmatpush2.msra.mxu0 0.0
    %596 = vmatprep.subr.mxu0 0.0
    %597 = vmatpush2.msra.mxu0 0.0
    %598 = vmatprep.subr.mxu0 0.0
    %599 = vmatpush2.msra.mxu0 0.0
    %600 = vmatprep.subr.mxu0 0.0
    %601 = vmatpush2.msra.mxu0 0.0
    %602 = vmatprep.subr.mxu0 0.0
    %603 = vmatpush2.msra.mxu0 0.0
    %604 = vmatprep.subr.mxu0 0.0
    %605 = vmatpush2.msra.mxu0 0.0
    %606 = vmatprep.subr.mxu0 0.0
    %607 = vmatpush2.msra.mxu0 0.0
    %608 = vmatprep.subr.mxu0 0.0
    %609 = vmatpush2.msra.mxu0 0.0
    %610 = vmatprep.subr.mxu0 0.0
    %611 = vmatpush2.msra.mxu0 0.0
    %612 = vmatprep.subr.mxu0 0.0
    %613 = vmatpush2.msra.mxu0 0.0
    %614 = vmatprep.subr.mxu0 0.0
    %615 = vmatpush2.msra.mxu0 0.0
    %616 = vmatprep.subr.mxu0 0.0
    %617 = vmatpush2.msra.mxu0 0.0
    %618 = vmatprep.subr.mxu0 0.0
    %619 = vmatpush2.msra.mxu0 0.0
    %620 = vmatprep.subr.mxu0 0.0
    %621 = vmatpush2.msra.mxu0 0.0
    %622 = vmatprep.subr.mxu0 0.0
    %623 = vmatpush2.msra.mxu0 0.0
    %624 = vmatprep.subr.mxu0 0.0
    %625 = vmatpush2.msra.mxu0 0.0
    %626 = vmatprep.mubr.f32.mxu0 0.0
    %627 = vmatmul.mubr.f32.gmra.mxu0 %v560
    %v628 = vpop.f32.mrf.mxu0
    %v629 = vadd.f32 0.0, %v628
    %v630 = vpop.f32.mrf.mxu0
    %631 = vdwg.mxu0
    %v633 = vrot.slane %v629, 6
    %v635 = vadd.f32 %v446, %v633
    %v636 = vtanh.pop %v635
    %v637 = vmul.f32 %v636, 0.5
    %v638 = vadd.f32 %v637, 0.5
    %v640 = vrot.slane %v542, 6
    %v642 = vmul.f32 %v638, %v640
    %644 = vrot.lane.b32.xlu0 %v636, 64
    %v645 = vpop.permute.xlu0 %644
    %v647 = vmul.f32 %v638, %v645
    %649 = vrot.lane.b32.xlu0 %v647, 32
    %v650 = vpop.permute.xlu0 %649
    %v652 = vadd.f32 %v642, %v650
    %v653 = vtanh.pop %v652
    %655 = vrot.lane.b32.xlu0 %v653, 64
    %v656 = vpop.permute.xlu0 %655
    %v658 = vmul.f32 %v638, %v656
    %660 = vrot.lane.b32.xlu0 %v658, 32
    %v661 = vpop.permute.xlu0 %660
    %v663 = vrot.slane %v658, 1
    %664 = vrot.lane.b32.xlu0 %v663, 64
    %v665 = vpop.permute.xlu0 %664
    %v667 = vsel %vm454, %v661, %v665
    %vm668 = vcmask 518146
    %669 = vst.msk [vmem:[#allocation2 - $0x1] sm:$0x4] %vm668, %v667
    %v670 = vrot.slane %v658, 2
    %671 = vrot.lane.b32.xlu0 %v670, 32
    %v672 = vpop.permute.xlu0 %671
    %v673 = vsel %vm454, %v672, 0
    %675 = vmatprep.subr.mxu0 0.0
    %676 = vmatpush1.msra.mxu0 0.0
    %677 = vmatprep.subr.mxu0 0.0
    %678 = vmatpush1.msra.mxu0 0.0
    %679 = vmatprep.subr.mxu0 0.0
    %680 = vmatpush1.msra.mxu0 0.0
    %681 = vmatprep.subr.mxu0 0.0
    %682 = vmatpush1.msra.mxu0 0.0
    %683 = vmatprep.subr.mxu0 0.0
    %684 = vmatpush1.msra.mxu0 0.0
    %685 = vmatprep.subr.mxu0 0.0
    %686 = vmatpush1.msra.mxu0 0.0
    %687 = vmatprep.subr.mxu0 0.0
    %688 = vmatpush1.msra.mxu0 0.0
    %689 = vmatprep.subr.mxu0 0.0
    %690 = vmatpush1.msra.mxu0 0.0
    %691 = vmatprep.subr.mxu0 0.0
    %692 = vmatpush1.msra.mxu0 0.0
    %693 = vmatprep.subr.mxu0 0.0
    %694 = vmatpush1.msra.mxu0 0.0
    %695 = vmatprep.subr.mxu0 0.0
    %696 = vmatpush1.msra.mxu0 0.0
    %697 = vmatprep.subr.mxu0 0.0
    %698 = vmatpush1.msra.mxu0 0.0
    %699 = vmatprep.subr.mxu0 0.0
    %700 = vmatpush1.msra.mxu0 %v364
    %701 = vmatprep.subr.mxu0 0.0
    %702 = vmatpush1.msra.mxu0 %v363
    %703 = vmatprep.subr.mxu0 0.0
    %704 = vmatpush1.msra.mxu0 %v362
    %705 = vmatprep.subr.mxu0 0.0
    %706 = vmatpush1.msra.mxu0 %v361
    %707 = vmatprep.subr.mxu0 0.0
    %708 = vmatpush2.msra.mxu0 0.0
    %709 = vmatprep.subr.mxu0 0.0
    %710 = vmatpush2.msra.mxu0 0.0
    %711 = vmatprep.subr.mxu0 0.0
    %712 = vmatpush2.msra.mxu0 0.0
    %713 = vmatprep.subr.mxu0 0.0
    %714 = vmatpush2.msra.mxu0 0.0
    %715 = vmatprep.subr.mxu0 0.0
    %716 = vmatpush2.msra.mxu0 0.0
    %717 = vmatprep.subr.mxu0 0.0
    %718 = vmatpush2.msra.mxu0 0.0
    %719 = vmatprep.subr.mxu0 0.0
    %720 = vmatpush2.msra.mxu0 0.0
    %721 = vmatprep.subr.mxu0 0.0
    %722 = vmatpush2.msra.mxu0 0.0
    %723 = vmatprep.subr.mxu0 0.0
    %724 = vmatpush2.msra.mxu0 0.0
    %725 = vmatprep.subr.mxu0 0.0
    %726 = vmatpush2.msra.mxu0 0.0
    %727 = vmatprep.subr.mxu0 0.0
    %728 = vmatpush2.msra.mxu0 0.0
    %729 = vmatprep.subr.mxu0 0.0
    %730 = vmatpush2.msra.mxu0 0.0
    %731 = vmatprep.subr.mxu0 0.0
    %732 = vmatpush2.msra.mxu0 0.0
    %733 = vmatprep.subr.mxu0 0.0
    %734 = vmatpush2.msra.mxu0 0.0
    %735 = vmatprep.subr.mxu0 0.0
    %736 = vmatpush2.msra.mxu0 0.0
    %737 = vmatprep.subr.mxu0 0.0
    %738 = vmatpush2.msra.mxu0 0.0
    %739 = vmatprep.mubr.f32.mxu0 0.0
    %740 = vmatmul.mubr.f32.gmra.mxu0 %v673
    %v741 = vpop.f32.mrf.mxu0
    %v742 = vadd.f32 0.0, %v741
    %v743 = vpop.f32.mrf.mxu0
    %744 = vdwg.mxu0
    %v746 = vrot.slane %v742, 4
    %v748 = vadd.f32 %v446, %v746
    %v749 = vtanh.pop %v748
    %v750 = vmul.f32 %v749, 0.5
    %v751 = vadd.f32 %v750, 0.5
    %v753 = vrot.slane %v652, 6
    %v755 = vmul.f32 %v751, %v753
    %757 = vrot.lane.b32.xlu0 %v749, 64
    %v758 = vpop.permute.xlu0 %757
    %v760 = vmul.f32 %v751, %v758
    %762 = vrot.lane.b32.xlu0 %v760, 32
    %v763 = vpop.permute.xlu0 %762
    %v765 = vadd.f32 %v755, %v763
    %v766 = vtanh.pop %v765
    %768 = vrot.lane.b32.xlu0 %v766, 64
    %v769 = vpop.permute.xlu0 %768
    %v771 = vmul.f32 %v751, %v769
    %773 = vrot.lane.b32.xlu0 %v771, 32
    %v774 = vpop.permute.xlu0 %773
    %v776 = vrot.slane %v771, 1
    %777 = vrot.lane.b32.xlu0 %v776, 64
    %v778 = vpop.permute.xlu0 %777
    %v780 = vsel %vm454, %v774, %v778
    %vm781 = vcmask 520196
    %782 = vst.msk [vmem:[#allocation2 - $0x2] sm:$0x10] %vm781, %v780
    %v783 = vrot.slane %v771, 4
    %784 = vrot.lane.b32.xlu0 %v783, 32
    %v785 = vpop.permute.xlu0 %784
    %v786 = vsel %vm454, %v785, 0
    %788 = vmatprep.subr.mxu0 0.0
    %789 = vmatpush1.msra.mxu0 0.0
    %790 = vmatprep.subr.mxu0 0.0
    %791 = vmatpush1.msra.mxu0 0.0
    %792 = vmatprep.subr.mxu0 0.0
    %793 = vmatpush1.msra.mxu0 0.0
    %794 = vmatprep.subr.mxu0 0.0
    %795 = vmatpush1.msra.mxu0 0.0
    %796 = vmatprep.subr.mxu0 0.0
    %797 = vmatpush1.msra.mxu0 0.0
    %798 = vmatprep.subr.mxu0 0.0
    %799 = vmatpush1.msra.mxu0 0.0
    %800 = vmatprep.subr.mxu0 0.0
    %801 = vmatpush1.msra.mxu0 0.0
    %802 = vmatprep.subr.mxu0 0.0
    %803 = vmatpush1.msra.mxu0 0.0
    %804 = vmatprep.subr.mxu0 0.0
    %805 = vmatpush1.msra.mxu0 0.0
    %806 = vmatprep.subr.mxu0 0.0
    %807 = vmatpush1.msra.mxu0 0.0
    %808 = vmatprep.subr.mxu0 0.0
    %809 = vmatpush1.msra.mxu0 0.0
    %810 = vmatprep.subr.mxu0 0.0
    %811 = vmatpush1.msra.mxu0 0.0
    %812 = vmatprep.subr.mxu0 0.0
    %813 = vmatpush1.msra.mxu0 %v364
    %814 = vmatprep.subr.mxu0 0.0
    %815 = vmatpush1.msra.mxu0 %v363
    %816 = vmatprep.subr.mxu0 0.0
    %817 = vmatpush1.msra.mxu0 %v362
    %818 = vmatprep.subr.mxu0 0.0
    %819 = vmatpush1.msra.mxu0 %v361
    %820 = vmatprep.subr.mxu0 0.0
    %821 = vmatpush2.msra.mxu0 0.0
    %822 = vmatprep.subr.mxu0 0.0
    %823 = vmatpush2.msra.mxu0 0.0
    %824 = vmatprep.subr.mxu0 0.0
    %825 = vmatpush2.msra.mxu0 0.0
    %826 = vmatprep.subr.mxu0 0.0
    %827 = vmatpush2.msra.mxu0 0.0
    %828 = vmatprep.subr.mxu0 0.0
    %829 = vmatpush2.msra.mxu0 0.0
    %830 = vmatprep.subr.mxu0 0.0
    %831 = vmatpush2.msra.mxu0 0.0
    %832 = vmatprep.subr.mxu0 0.0
    %833 = vmatpush2.msra.mxu0 0.0
    %834 = vmatprep.subr.mxu0 0.0
    %835 = vmatpush2.msra.mxu0 0.0
    %836 = vmatprep.subr.mxu0 0.0
    %837 = vmatpush2.msra.mxu0 0.0
    %838 = vmatprep.subr.mxu0 0.0
    %839 = vmatpush2.msra.mxu0 0.0
    %840 = vmatprep.subr.mxu0 0.0
    %841 = vmatpush2.msra.mxu0 0.0
    %842 = vmatprep.subr.mxu0 0.0
    %843 = vmatpush2.msra.mxu0 0.0
    %844 = vmatprep.subr.mxu0 0.0
    %845 = vmatpush2.msra.mxu0 0.0
    %846 = vmatprep.subr.mxu0 0.0
    %847 = vmatpush2.msra.mxu0 0.0
    %848 = vmatprep.subr.mxu0 0.0
    %849 = vmatpush2.msra.mxu0 0.0
    %850 = vmatprep.subr.mxu0 0.0
    %851 = vmatpush2.msra.mxu0 0.0
    %852 = vmatprep.mubr.f32.mxu0 0.0
    %853 = vmatmul.mubr.f32.gmra.mxu0 %v786
    %v854 = vpop.f32.mrf.mxu0
    %v855 = vadd.f32 0.0, %v854
    %v856 = vpop.f32.mrf.mxu0
    %857 = vdwg.mxu0
    %v859 = vrot.slane %v855, 2
    %v861 = vadd.f32 %v446, %v859
    %v862 = vtanh.pop %v861
    %v863 = vmul.f32 %v862, 0.5
    %v864 = vadd.f32 %v863, 0.5
    %v866 = vrot.slane %v765, 6
    %v868 = vmul.f32 %v864, %v866
    %870 = vrot.lane.b32.xlu0 %v862, 64
    %v871 = vpop.permute.xlu0 %870
    %v873 = vmul.f32 %v864, %v871
    %875 = vrot.lane.b32.xlu0 %v873, 32
    %v876 = vpop.permute.xlu0 %875
    %v878 = vadd.f32 %v868, %v876
    %v879 = vtanh.pop %v878
    %881 = vrot.lane.b32.xlu0 %v879, 64
    %v882 = vpop.permute.xlu0 %881
    %v884 = vmul.f32 %v864, %v882
    %886 = vrot.lane.b32.xlu0 %v884, 32
    %v887 = vpop.permute.xlu0 %886
    %v889 = vrot.slane %v884, 1
    %890 = vrot.lane.b32.xlu0 %v889, 64
    %v891 = vpop.permute.xlu0 %890
    %v893 = vsel %vm454, %v887, %v891
    %vm894 = vcmask 522246
    %895 = vst.msk [vmem:[#allocation2 - $0x3] sm:$0x40] %vm894, %v893
    %v896 = vrot.slane %v884, 6
    %897 = vrot.lane.b32.xlu0 %v896, 32
    %v898 = vpop.permute.xlu0 %897
    %v899 = vsel %vm454, %v898, 0
    %901 = vmatprep.subr.mxu0 0.0
    %902 = vmatpush1.msra.mxu0 0.0
    %903 = vmatprep.subr.mxu0 0.0
    %904 = vmatpush1.msra.mxu0 0.0
    %905 = vmatprep.subr.mxu0 0.0
    %906 = vmatpush1.msra.mxu0 0.0
    %907 = vmatprep.subr.mxu0 0.0
    %908 = vmatpush1.msra.mxu0 0.0
    %909 = vmatprep.subr.mxu0 0.0
    %910 = vmatpush1.msra.mxu0 0.0
    %911 = vmatprep.subr.mxu0 0.0
    %912 = vmatpush1.msra.mxu0 0.0
    %913 = vmatprep.subr.mxu0 0.0
    %914 = vmatpush1.msra.mxu0 0.0
    %915 = vmatprep.subr.mxu0 0.0
    %916 = vmatpush1.msra.mxu0 0.0
    %917 = vmatprep.subr.mxu0 0.0
    %918 = vmatpush1.msra.mxu0 0.0
    %919 = vmatprep.subr.mxu0 0.0
    %920 = vmatpush1.msra.mxu0 0.0
    %921 = vmatprep.subr.mxu0 0.0
    %922 = vmatpush1.msra.mxu0 0.0
    %923 = vmatprep.subr.mxu0 0.0
    %924 = vmatpush1.msra.mxu0 0.0
    %925 = vmatprep.subr.mxu0 0.0
    %926 = vmatpush1.msra.mxu0 %v364
    %927 = vmatprep.subr.mxu0 0.0
    %928 = vmatpush1.msra.mxu0 %v363
    %929 = vmatprep.subr.mxu0 0.0
    %930 = vmatpush1.msra.mxu0 %v362
    %931 = vmatprep.subr.mxu0 0.0
    %932 = vmatpush1.msra.mxu0 %v361
    %933 = vmatprep.subr.mxu0 0.0
    %934 = vmatpush2.msra.mxu0 0.0
    %935 = vmatprep.subr.mxu0 0.0
    %936 = vmatpush2.msra.mxu0 0.0
    %937 = vmatprep.subr.mxu0 0.0
    %938 = vmatpush2.msra.mxu0 0.0
    %939 = vmatprep.subr.mxu0 0.0
    %940 = vmatpush2.msra.mxu0 0.0
    %941 = vmatprep.subr.mxu0 0.0
    %942 = vmatpush2.msra.mxu0 0.0
    %943 = vmatprep.subr.mxu0 0.0
    %944 = vmatpush2.msra.mxu0 0.0
    %945 = vmatprep.subr.mxu0 0.0
    %946 = vmatpush2.msra.mxu0 0.0
    %947 = vmatprep.subr.mxu0 0.0
    %948 = vmatpush2.msra.mxu0 0.0
    %949 = vmatprep.subr.mxu0 0.0
    %950 = vmatpush2.msra.mxu0 0.0
    %951 = vmatprep.subr.mxu0 0.0
    %952 = vmatpush2.msra.mxu0 0.0
    %953 = vmatprep.subr.mxu0 0.0
    %954 = vmatpush2.msra.mxu0 0.0
    %955 = vmatprep.subr.mxu0 0.0
    %956 = vmatpush2.msra.mxu0 0.0
    %957 = vmatprep.subr.mxu0 0.0
    %958 = vmatpush2.msra.mxu0 0.0
    %959 = vmatprep.subr.mxu0 0.0
    %960 = vmatpush2.msra.mxu0 0.0
    %961 = vmatprep.subr.mxu0 0.0
    %962 = vmatpush2.msra.mxu0 0.0
    %963 = vmatprep.subr.mxu0 0.0
    %964 = vmatpush2.msra.mxu0 0.0
    %965 = vmatprep.mubr.f32.mxu0 0.0
    %966 = vmatmul.mubr.f32.gmra.mxu0 %v899
    %v967 = vpop.f32.mrf.mxu0
    %v968 = vadd.f32 0.0, %v967
    %v969 = vpop.f32.mrf.mxu0
    %970 = vdwg.mxu0
    %v971 = vadd.f32 %v451, %v968
    %v972 = vtanh.pop %v971
    %v973 = vmul.f32 %v972, 0.5
    %v974 = vadd.f32 %v973, 0.5
    %v976 = vrot.slane %v878, 6
    %v978 = vmul.f32 %v974, %v976
    %980 = vrot.lane.b32.xlu0 %v972, 64
    %v981 = vpop.permute.xlu0 %980
    %v983 = vmul.f32 %v974, %v981
    %985 = vrot.lane.b32.xlu0 %v983, 32
    %v986 = vpop.permute.xlu0 %985
    %v988 = vadd.f32 %v978, %v986
    %v989 = vtanh.pop %v988
    %991 = vrot.lane.b32.xlu0 %v989, 64
    %v992 = vpop.permute.xlu0 %991
    %v994 = vmul.f32 %v974, %v992
    %996 = vrot.lane.b32.xlu0 %v994, 32
    %v997 = vpop.permute.xlu0 %996
    %v999 = vrot.slane %v994, 1
    %1000 = vrot.lane.b32.xlu0 %v999, 64
    %v1001 = vpop.permute.xlu0 %1000
    %v1003 = vsel %vm454, %v997, %v1001
    %1004 = vst.msk [vmem:[#allocation2 + $0x4] sm:$0x1] %vm558, %v1003
    %v1005 = vsel %vm454, %v997, 0
    %1007 = vmatprep.subr.mxu0 0.0
    %1008 = vmatpush1.msra.mxu0 0.0
    %1009 = vmatprep.subr.mxu0 0.0
    %1010 = vmatpush1.msra.mxu0 0.0
    %1011 = vmatprep.subr.mxu0 0.0
    %1012 = vmatpush1.msra.mxu0 0.0
    %1013 = vmatprep.subr.mxu0 0.0
    %1014 = vmatpush1.msra.mxu0 0.0
    %1015 = vmatprep.subr.mxu0 0.0
    %1016 = vmatpush1.msra.mxu0 0.0
    %1017 = vmatprep.subr.mxu0 0.0
    %1018 = vmatpush1.msra.mxu0 0.0
    %1019 = vmatprep.subr.mxu0 0.0
    %1020 = vmatpush1.msra.mxu0 0.0
    %1021 = vmatprep.subr.mxu0 0.0
    %1022 = vmatpush1.msra.mxu0 0.0
    %1023 = vmatprep.subr.mxu0 0.0
    %1024 = vmatpush1.msra.mxu0 0.0
    %1025 = vmatprep.subr.mxu0 0.0
    %1026 = vmatpush1.msra.mxu0 0.0
    %1027 = vmatprep.subr.mxu0 0.0
    %1028 = vmatpush1.msra.mxu0 0.0
    %1029 = vmatprep.subr.mxu0 0.0
    %1030 = vmatpush1.msra.mxu0 0.0
    %1031 = vmatprep.subr.mxu0 0.0
    %1032 = vmatpush1.msra.mxu0 %v364
    %1033 = vmatprep.subr.mxu0 0.0
    %1034 = vmatpush1.msra.mxu0 %v363
    %1035 = vmatprep.subr.mxu0 0.0
    %1036 = vmatpush1.msra.mxu0 %v362
    %1037 = vmatprep.subr.mxu0 0.0
    %1038 = vmatpush1.msra.mxu0 %v361
    %1039 = vmatprep.subr.mxu0 0.0
    %1040 = vmatpush2.msra.mxu0 0.0
    %1041 = vmatprep.subr.mxu0 0.0
    %1042 = vmatpush2.msra.mxu0 0.0
    %1043 = vmatprep.subr.mxu0 0.0
    %1044 = vmatpush2.msra.mxu0 0.0
    %1045 = vmatprep.subr.mxu0 0.0
    %1046 = vmatpush2.msra.mxu0 0.0
    %1047 = vmatprep.subr.mxu0 0.0
    %1048 = vmatpush2.msra.mxu0 0.0
    %1049 = vmatprep.subr.mxu0 0.0
    %1050 = vmatpush2.msra.mxu0 0.0
    %1051 = vmatprep.subr.mxu0 0.0
    %1052 = vmatpush2.msra.mxu0 0.0
    %1053 = vmatprep.subr.mxu0 0.0
    %1054 = vmatpush2.msra.mxu0 0.0
    %1055 = vmatprep.subr.mxu0 0.0
    %1056 = vmatpush2.msra.mxu0 0.0
    %1057 = vmatprep.subr.mxu0 0.0
    %1058 = vmatpush2.msra.mxu0 0.0
    %1059 = vmatprep.subr.mxu0 0.0
    %1060 = vmatpush2.msra.mxu0 0.0
    %1061 = vmatprep.subr.mxu0 0.0
    %1062 = vmatpush2.msra.mxu0 0.0
    %1063 = vmatprep.subr.mxu0 0.0
    %1064 = vmatpush2.msra.mxu0 0.0
    %1065 = vmatprep.subr.mxu0 0.0
    %1066 = vmatpush2.msra.mxu0 0.0
    %1067 = vmatprep.subr.mxu0 0.0
    %1068 = vmatpush2.msra.mxu0 0.0
    %1069 = vmatprep.subr.mxu0 0.0
    %1070 = vmatpush2.msra.mxu0 0.0
    %1071 = vmatprep.mubr.f32.mxu0 0.0
    %1072 = vmatmul.mubr.f32.gmra.mxu0 %v1005
    %v1073 = vpop.f32.mrf.mxu0
    %v1074 = vadd.f32 0.0, %v1073
    %v1075 = vpop.f32.mrf.mxu0
    %1076 = vdwg.mxu0
    %v1078 = vrot.slane %v1074, 6
    %v1080 = vadd.f32 %v451, %v1078
    %v1081 = vtanh.pop %v1080
    %v1082 = vmul.f32 %v1081, 0.5
    %v1083 = vadd.f32 %v1082, 0.5
    %v1085 = vrot.slane %v988, 6
    %v1087 = vmul.f32 %v1083, %v1085
    %1089 = vrot.lane.b32.xlu0 %v1081, 64
    %v1090 = vpop.permute.xlu0 %1089
    %v1092 = vmul.f32 %v1083, %v1090
    %1094 = vrot.lane.b32.xlu0 %v1092, 32
    %v1095 = vpop.permute.xlu0 %1094
    %v1097 = vadd.f32 %v1087, %v1095
    %v1098 = vtanh.pop %v1097
    %1100 = vrot.lane.b32.xlu0 %v1098, 64
    %v1101 = vpop.permute.xlu0 %1100
    %v1103 = vmul.f32 %v1083, %v1101
    %1105 = vrot.lane.b32.xlu0 %v1103, 32
    %v1106 = vpop.permute.xlu0 %1105
    %v1108 = vrot.slane %v1103, 1
    %1109 = vrot.lane.b32.xlu0 %v1108, 64
    %v1110 = vpop.permute.xlu0 %1109
    %v1112 = vsel %vm454, %v1106, %v1110
    %1113 = vst.msk [vmem:[#allocation2 + $0x3] sm:$0x4] %vm668, %v1112
    %v1114 = vrot.slane %v1103, 2
    %1115 = vrot.lane.b32.xlu0 %v1114, 32
    %v1116 = vpop.permute.xlu0 %1115
    %v1117 = vsel %vm454, %v1116, 0
    %1119 = vmatprep.subr.mxu0 0.0
    %1120 = vmatpush1.msra.mxu0 0.0
    %1121 = vmatprep.subr.mxu0 0.0
    %1122 = vmatpush1.msra.mxu0 0.0
    %1123 = vmatprep.subr.mxu0 0.0
    %1124 = vmatpush1.msra.mxu0 0.0
    %1125 = vmatprep.subr.mxu0 0.0
    %1126 = vmatpush1.msra.mxu0 0.0
    %1127 = vmatprep.subr.mxu0 0.0
    %1128 = vmatpush1.msra.mxu0 0.0
    %1129 = vmatprep.subr.mxu0 0.0
    %1130 = vmatpush1.msra.mxu0 0.0
    %1131 = vmatprep.subr.mxu0 0.0
    %1132 = vmatpush1.msra.mxu0 0.0
    %1133 = vmatprep.subr.mxu0 0.0
    %1134 = vmatpush1.msra.mxu0 0.0
    %1135 = vmatprep.subr.mxu0 0.0
    %1136 = vmatpush1.msra.mxu0 0.0
    %1137 = vmatprep.subr.mxu0 0.0
    %1138 = vmatpush1.msra.mxu0 0.0
    %1139 = vmatprep.subr.mxu0 0.0
    %1140 = vmatpush1.msra.mxu0 0.0
    %1141 = vmatprep.subr.mxu0 0.0
    %1142 = vmatpush1.msra.mxu0 0.0
    %1143 = vmatprep.subr.mxu0 0.0
    %1144 = vmatpush1.msra.mxu0 %v364
    %1145 = vmatprep.subr.mxu0 0.0
    %1146 = vmatpush1.msra.mxu0 %v363
    %1147 = vmatprep.subr.mxu0 0.0
    %1148 = vmatpush1.msra.mxu0 %v362
    %1149 = vmatprep.subr.mxu0 0.0
    %1150 = vmatpush1.msra.mxu0 %v361
    %1151 = vmatprep.subr.mxu0 0.0
    %1152 = vmatpush2.msra.mxu0 0.0
    %1153 = vmatprep.subr.mxu0 0.0
    %1154 = vmatpush2.msra.mxu0 0.0
    %1155 = vmatprep.subr.mxu0 0.0
    %1156 = vmatpush2.msra.mxu0 0.0
    %1157 = vmatprep.subr.mxu0 0.0
    %1158 = vmatpush2.msra.mxu0 0.0
    %1159 = vmatprep.subr.mxu0 0.0
    %1160 = vmatpush2.msra.mxu0 0.0
    %1161 = vmatprep.subr.mxu0 0.0
    %1162 = vmatpush2.msra.mxu0 0.0
    %1163 = vmatprep.subr.mxu0 0.0
    %1164 = vmatpush2.msra.mxu0 0.0
    %1165 = vmatprep.subr.mxu0 0.0
    %1166 = vmatpush2.msra.mxu0 0.0
    %1167 = vmatprep.subr.mxu0 0.0
    %1168 = vmatpush2.msra.mxu0 0.0
    %1169 = vmatprep.subr.mxu0 0.0
    %1170 = vmatpush2.msra.mxu0 0.0
    %1171 = vmatprep.subr.mxu0 0.0
    %1172 = vmatpush2.msra.mxu0 0.0
    %1173 = vmatprep.subr.mxu0 0.0
    %1174 = vmatpush2.msra.mxu0 0.0
    %1175 = vmatprep.subr.mxu0 0.0
    %1176 = vmatpush2.msra.mxu0 0.0
    %1177 = vmatprep.subr.mxu0 0.0
    %1178 = vmatpush2.msra.mxu0 0.0
    %1179 = vmatprep.subr.mxu0 0.0
    %1180 = vmatpush2.msra.mxu0 0.0
    %1181 = vmatprep.subr.mxu0 0.0
    %1182 = vmatpush2.msra.mxu0 0.0
    %1183 = vmatprep.mubr.f32.mxu0 0.0
    %1184 = vmatmul.mubr.f32.gmra.mxu0 %v1117
    %v1185 = vpop.f32.mrf.mxu0
    %v1186 = vadd.f32 0.0, %v1185
    %v1187 = vpop.f32.mrf.mxu0
    %1188 = vdwg.mxu0
    %v1190 = vrot.slane %v1186, 4
    %v1192 = vadd.f32 %v451, %v1190
    %v1193 = vtanh.pop %v1192
    %v1194 = vmul.f32 %v1193, 0.5
    %v1195 = vadd.f32 %v1194, 0.5
    %v1197 = vrot.slane %v1097, 6
    %v1199 = vmul.f32 %v1195, %v1197
    %1201 = vrot.lane.b32.xlu0 %v1193, 64
    %v1202 = vpop.permute.xlu0 %1201
    %v1204 = vmul.f32 %v1195, %v1202
    %1206 = vrot.lane.b32.xlu0 %v1204, 32
    %v1207 = vpop.permute.xlu0 %1206
    %v1209 = vadd.f32 %v1199, %v1207
    %v1210 = vtanh.pop %v1209
    %1212 = vrot.lane.b32.xlu0 %v1210, 64
    %v1213 = vpop.permute.xlu0 %1212
    %v1215 = vmul.f32 %v1195, %v1213
    %1217 = vrot.lane.b32.xlu0 %v1215, 32
    %v1218 = vpop.permute.xlu0 %1217
    %v1220 = vrot.slane %v1215, 1
    %1221 = vrot.lane.b32.xlu0 %v1220, 64
    %v1222 = vpop.permute.xlu0 %1221
    %v1224 = vsel %vm454, %v1218, %v1222
    %1225 = vst.msk [vmem:[#allocation2 + $0x2] sm:$0x10] %vm781, %v1224
    %v1226 = vrot.slane %v1215, 4
    %1227 = vrot.lane.b32.xlu0 %v1226, 32
    %v1228 = vpop.permute.xlu0 %1227
    %v1229 = vsel %vm454, %v1228, 0
    %1231 = vmatprep.subr.mxu0 0.0
    %1232 = vmatpush1.msra.mxu0 0.0
    %1233 = vmatprep.subr.mxu0 0.0
    %1234 = vmatpush1.msra.mxu0 0.0
    %1235 = vmatprep.subr.mxu0 0.0
    %1236 = vmatpush1.msra.mxu0 0.0
    %1237 = vmatprep.subr.mxu0 0.0
    %1238 = vmatpush1.msra.mxu0 0.0
    %1239 = vmatprep.subr.mxu0 0.0
    %1240 = vmatpush1.msra.mxu0 0.0
    %1241 = vmatprep.subr.mxu0 0.0
    %1242 = vmatpush1.msra.mxu0 0.0
    %1243 = vmatprep.subr.mxu0 0.0
    %1244 = vmatpush1.msra.mxu0 0.0
    %1245 = vmatprep.subr.mxu0 0.0
    %1246 = vmatpush1.msra.mxu0 0.0
    %1247 = vmatprep.subr.mxu0 0.0
    %1248 = vmatpush1.msra.mxu0 0.0
    %1249 = vmatprep.subr.mxu0 0.0
    %1250 = vmatpush1.msra.mxu0 0.0
    %1251 = vmatprep.subr.mxu0 0.0
    %1252 = vmatpush1.msra.mxu0 0.0
    %1253 = vmatprep.subr.mxu0 0.0
    %1254 = vmatpush1.msra.mxu0 0.0
    %1255 = vmatprep.subr.mxu0 0.0
    %1256 = vmatpush1.msra.mxu0 %v364
    %1257 = vmatprep.subr.mxu0 0.0
    %1258 = vmatpush1.msra.mxu0 %v363
    %1259 = vmatprep.subr.mxu0 0.0
    %1260 = vmatpush1.msra.mxu0 %v362
    %1261 = vmatprep.subr.mxu0 0.0
    %1262 = vmatpush1.msra.mxu0 %v361
    %1263 = vmatprep.subr.mxu0 0.0
    %1264 = vmatpush2.msra.mxu0 0.0
    %1265 = vmatprep.subr.mxu0 0.0
    %1266 = vmatpush2.msra.mxu0 0.0
    %1267 = vmatprep.subr.mxu0 0.0
    %1268 = vmatpush2.msra.mxu0 0.0
    %1269 = vmatprep.subr.mxu0 0.0
    %1270 = vmatpush2.msra.mxu0 0.0
    %1271 = vmatprep.subr.mxu0 0.0
    %1272 = vmatpush2.msra.mxu0 0.0
    %1273 = vmatprep.subr.mxu0 0.0
    %1274 = vmatpush2.msra.mxu0 0.0
    %1275 = vmatprep.subr.mxu0 0.0
    %1276 = vmatpush2.msra.mxu0 0.0
    %1277 = vmatprep.subr.mxu0 0.0
    %1278 = vmatpush2.msra.mxu0 0.0
    %1279 = vmatprep.subr.mxu0 0.0
    %1280 = vmatpush2.msra.mxu0 0.0
    %1281 = vmatprep.subr.mxu0 0.0
    %1282 = vmatpush2.msra.mxu0 0.0
    %1283 = vmatprep.subr.mxu0 0.0
    %1284 = vmatpush2.msra.mxu0 0.0
    %1285 = vmatprep.subr.mxu0 0.0
    %1286 = vmatpush2.msra.mxu0 0.0
    %1287 = vmatprep.subr.mxu0 0.0
    %1288 = vmatpush2.msra.mxu0 0.0
    %1289 = vmatprep.subr.mxu0 0.0
    %1290 = vmatpush2.msra.mxu0 0.0
    %1291 = vmatprep.subr.mxu0 0.0
    %1292 = vmatpush2.msra.mxu0 0.0
    %1293 = vmatprep.subr.mxu0 0.0
    %1294 = vmatpush2.msra.mxu0 0.0
    %1295 = vmatprep.mubr.f32.mxu0 0.0
    %1296 = vmatmul.mubr.f32.gmra.mxu0 %v1229
    %v1297 = vpop.f32.mrf.mxu0
    %v1298 = vadd.f32 0.0, %v1297
    %v1299 = vpop.f32.mrf.mxu0
    %1300 = vdwg.mxu0
    %v1302 = vrot.slane %v1298, 2
    %v1304 = vadd.f32 %v451, %v1302
    %v1305 = vtanh.pop %v1304
    %v1306 = vmul.f32 %v1305, 0.5
    %v1307 = vadd.f32 %v1306, 0.5
    %v1309 = vrot.slane %v1209, 6
    %v1311 = vmul.f32 %v1307, %v1309
    %1313 = vrot.lane.b32.xlu0 %v1305, 64
    %v1314 = vpop.permute.xlu0 %1313
    %v1316 = vmul.f32 %v1307, %v1314
    %1318 = vrot.lane.b32.xlu0 %v1316, 32
    %v1319 = vpop.permute.xlu0 %1318
    %v1321 = vadd.f32 %v1311, %v1319
    %v1322 = vtanh.pop %v1321
    %1324 = vrot.lane.b32.xlu0 %v1322, 64
    %v1325 = vpop.permute.xlu0 %1324
    %v1327 = vmul.f32 %v1307, %v1325
    %1329 = vrot.lane.b32.xlu0 %v1327, 32
    %v1330 = vpop.permute.xlu0 %1329
    %v1332 = vrot.slane %v1327, 1
    %1333 = vrot.lane.b32.xlu0 %v1332, 64
    %v1334 = vpop.permute.xlu0 %1333
    %v1336 = vsel %vm454, %v1330, %v1334
    %1337 = vst.msk [vmem:[#allocation2 + $0x1] sm:$0x40] %vm894, %v1336
    %v1338 = vld [vmem:[#allocation2] sm:$0xff]
    %v1339 = vld [vmem:[%s8] sm:$0xff]
    %v1340 = vld [vmem:[%s8 + $0x8] sm:$0xff]
    %v1341 = vld [vmem:[%s8 + $0x10] sm:$0xff]
    %v1342 = vld [vmem:[%s8 + $0x18] sm:$0xff]
    %v1343 = vld [vmem:[%s8 + $0x20] sm:$0xff]
    %v1344 = vld [vmem:[%s8 + $0x28] sm:$0xff]
    %v1345 = vld [vmem:[%s8 + $0x30] sm:$0xff]
    %v1346 = vld [vmem:[%s8 + $0x38] sm:$0xff]
    %v1347 = vld [vmem:[#allocation10] sm:$0x1]
    %v1349 = vlaneseq
    %v1350 = vshrl.u32 %v1349, 7
    %v1351 = vsub.s32 0, %v1350
    %v1352 = vrot.slane %v1347, %v1351
    %v1355 = vsel %vm277, %v1338, 0
    %1357 = vmatprep.subr.mxu0 0.0
    %1358 = vmatpush1.msra.mxu0 0.0
    %1359 = vmatprep.subr.mxu0 0.0
    %1360 = vmatpush1.msra.mxu0 0.0
    %1361 = vmatprep.subr.mxu0 0.0
    %1362 = vmatpush1.msra.mxu0 0.0
    %1363 = vmatprep.subr.mxu0 0.0
    %1364 = vmatpush1.msra.mxu0 0.0
    %1365 = vmatprep.subr.mxu0 0.0
    %1366 = vmatpush1.msra.mxu0 0.0
    %1367 = vmatprep.subr.mxu0 0.0
    %1368 = vmatpush1.msra.mxu0 0.0
    %1369 = vmatprep.subr.mxu0 0.0
    %1370 = vmatpush1.msra.mxu0 0.0
    %1371 = vmatprep.subr.mxu0 0.0
    %1372 = vmatpush1.msra.mxu0 0.0
    %1373 = vmatprep.subr.mxu0 0.0
    %1374 = vmatpush1.msra.mxu0 %v1346
    %1375 = vmatprep.subr.mxu0 0.0
    %1376 = vmatpush1.msra.mxu0 %v1345
    %1377 = vmatprep.subr.mxu0 0.0
    %1378 = vmatpush1.msra.mxu0 %v1344
    %1379 = vmatprep.subr.mxu0 0.0
    %1380 = vmatpush1.msra.mxu0 %v1343
    %1381 = vmatprep.subr.mxu0 0.0
    %1382 = vmatpush1.msra.mxu0 %v1342
    %1383 = vmatprep.subr.mxu0 0.0
    %1384 = vmatpush1.msra.mxu0 %v1341
    %1385 = vmatprep.subr.mxu0 0.0
    %1386 = vmatpush1.msra.mxu0 %v1340
    %1387 = vmatprep.subr.mxu0 0.0
    %1388 = vmatpush1.msra.mxu0 %v1339
    %1389 = vmatprep.subr.mxu0 0.0
    %1390 = vmatpush2.msra.mxu0 0.0
    %1391 = vmatprep.subr.mxu0 0.0
    %1392 = vmatpush2.msra.mxu0 0.0
    %1393 = vmatprep.subr.mxu0 0.0
    %1394 = vmatpush2.msra.mxu0 0.0
    %1395 = vmatprep.subr.mxu0 0.0
    %1396 = vmatpush2.msra.mxu0 0.0
    %1397 = vmatprep.subr.mxu0 0.0
    %1398 = vmatpush2.msra.mxu0 0.0
    %1399 = vmatprep.subr.mxu0 0.0
    %1400 = vmatpush2.msra.mxu0 0.0
    %1401 = vmatprep.subr.mxu0 0.0
    %1402 = vmatpush2.msra.mxu0 0.0
    %1403 = vmatprep.subr.mxu0 0.0
    %1404 = vmatpush2.msra.mxu0 0.0
    %1405 = vmatprep.subr.mxu0 0.0
    %1406 = vmatpush2.msra.mxu0 0.0
    %1407 = vmatprep.subr.mxu0 0.0
    %1408 = vmatpush2.msra.mxu0 0.0
    %1409 = vmatprep.subr.mxu0 0.0
    %1410 = vmatpush2.msra.mxu0 0.0
    %1411 = vmatprep.subr.mxu0 0.0
    %1412 = vmatpush2.msra.mxu0 0.0
    %1413 = vmatprep.subr.mxu0 0.0
    %1414 = vmatpush2.msra.mxu0 0.0
    %1415 = vmatprep.subr.mxu0 0.0
    %1416 = vmatpush2.msra.mxu0 0.0
    %1417 = vmatprep.subr.mxu0 0.0
    %1418 = vmatpush2.msra.mxu0 0.0
    %1419 = vmatprep.subr.mxu0 0.0
    %1420 = vmatpush2.msra.mxu0 0.0
    %1421 = vmatprep.mubr.f32.mxu0 0.0
    %1422 = vmatmul.mubr.f32.gmra.mxu0 %v1355
    %v1423 = vpop.f32.mrf.mxu0
    %v1424 = vadd.f32 %v1352, %v1423
    %v1425 = vpop.f32.mrf.mxu0
    %1426 = vdwg.mxu0
    %1427 = vst [vmem:[%s10] sm:$0xff] %v1424
    // Predicated region
    $region62: #{decoder_forward.1} parent=1 // pred_check
      _
    $region63: #{decoder_forward.1} parent=1 // pred_check_branch
      %1429 = sbr.rel (0) target = $region65
    $region64: #{decoder_forward.1} parent=1 // pred_region
      _
    $region65: #{decoder_forward.1} parent=1 // pred_fallthru
      _
    // Predicated region
    $region66: #{decoder_forward.1} parent=1 // pred_check
      _
    $region67: #{decoder_forward.1} parent=1 // pred_check_branch
      %1431 = sbr.rel (0) target = $region69
    $region68: #{decoder_forward.1} parent=1 // pred_region
      _
    $region69: #{decoder_forward.1} parent=1 // pred_fallthru
      _
    %1432 = vsyncpa [#allocation4], 1
    %1433 = vsyncpa [#allocation6], 1
    %1434 = vsyncpa [#allocation9], 1

</llo_original>
